<compile_context>
chip_gen: v7x
topology: tpu7x:2x2x1
jax: 0.10.0
libtpu: 0.0.40
codegen_flags: <defaults>
</compile_context>

<pallas_src>
import functools
import math

import jax
import jax.numpy as jnp
from jax.experimental import pallas as pl
from jax.experimental.pallas import tpu as pltpu

EPS_LN = 1e-5                                   # nn.LayerNorm default eps
EPS_BN = 1e-5                                   # nn.BatchNorm default eps
BN_EVAL_SCALE = 1.0 / math.sqrt(1.0 + EPS_BN)   # eval-mode BN, fresh running stats

VMEM = pl.BlockSpec(memory_space=pltpu.MemorySpace.VMEM)


# ------------------------------ fused kernel ------------------------------- #

def _csgnet_fused_kernel(adjT_ref, xT_ref,
                         wrelT_ref, wrootT_ref, brelT_ref,
                         lngT_ref, lnbT_ref,
                         gc1wT_ref, gc1bT_ref, gc2wT_ref, gc2bT_ref,
                         fcw0_ref, fcb0_ref, fcw1_ref, fcb1_ref,
                         fcow_ref, fcob_ref,
                         o_ref):
    """Entire CSGNet forward for a small batch, all operands resident in VMEM.

    Activation layout is channels-leading: h has shape (channels, num_nodes).
    """
    B = adjT_ref.shape[0]
    gc2_dim = gc2wT_ref.shape[0]
    f32 = jnp.float32

    # Hoist weight loads out of the (static) batch loop.
    wrelT = wrelT_ref[...]      # (mid, Cin)
    wrootT = wrootT_ref[...]    # (mid, Cin)
    brelT = brelT_ref[...]      # (mid, 1)
    lngT = lngT_ref[...]        # (mid, N)
    lnbT = lnbT_ref[...]        # (mid, N)
    gc1wT = gc1wT_ref[...]      # (GC1, mid)   (BN1 eval scale folded)
    gc1bT = gc1bT_ref[...]      # (GC1, 1)
    gc2wT = gc2wT_ref[...]      # (GC2, GC1)   (BN2 eval scale folded)
    gc2bT = gc2bT_ref[...]      # (GC2, 1)
    fcb0 = fcb0_ref[...]        # (1, F0)      (BN folded)
    fcw1 = fcw1_ref[...]        # (F0, F1)     (BN folded)
    fcb1 = fcb1_ref[...]        # (1, F1)
    fcow = fcow_ref[...]        # (F1, OUT)
    fcob = fcob_ref[...]        # (1, OUT)

    for b in range(B):                               # tiny static batch: unroll
        xT = xT_ref[b]                               # (Cin, N)
        aT = adjT_ref[b]                             # (N, N) = A_b^T

        # conv1 (GraphConv) + act1 (ReLU), transposed & reassociated:
        #   out^T = Wrel^T (X^T A^T) + Wroot^T X^T + b_rel
        xr = jnp.dot(wrelT, xT, preferred_element_type=f32)        # (mid, N)
        agg = jnp.dot(xr, aT, preferred_element_type=f32)          # (mid, N)
        xroot = jnp.dot(wrootT, xT, preferred_element_type=f32)    # (mid, N)
        h = jnp.maximum(agg + xroot + brelT, 0.0)                  # (mid, N)

        # bn1 = LayerNorm((num_nodes, mid_channel)): per-sample stats over all
        # (node, channel) elements; elementwise affine in transposed layout.
        mean = jnp.mean(h, keepdims=True)                          # (1, 1)
        var = jnp.mean(jnp.square(h - mean), keepdims=True)        # (1, 1)
        h = (h - mean) * jax.lax.rsqrt(var + EPS_LN) * lngT + lnbT

        # permute/dropout(eval)/permute/unsqueeze are layout no-ops here.

        # global_conv1 (1x1) + ReLU + BatchNorm2d(eval, folded into weights)
        g1 = jnp.maximum(jnp.dot(gc1wT, h, preferred_element_type=f32) + gc1bT,
                         0.0)                                      # (GC1, N)
        # global_conv2 (1x1) + ReLU + BatchNorm2d(eval, folded into weights)
        g2 = jnp.maximum(jnp.dot(gc2wT, g1, preferred_element_type=f32) + gc2bT,
                         0.0)                                      # (GC2, N)

        # squeeze + view(B, -1): PyTorch flattens channel-major (c*N + n).
        # g2 is already (channel, node), so the flatten is a plain row-major
        # read: fc0 = sum_c g2[c, :] @ W0[c*N:(c+1)*N, :].
        f0 = fcb0                                                  # (1, F0)
        for c in range(gc2_dim):
            f0 = f0 + jnp.dot(g2[c:c + 1, :], fcw0_ref[c],
                              preferred_element_type=f32)          # (1, F0)
        f0 = jnp.maximum(f0, 0.0)     # Linear -> BN(eval, folded) -> ReLU
        f1 = jnp.maximum(jnp.dot(f0, fcw1, preferred_element_type=f32) + fcb1,
                         0.0)                                      # (1, F1)

        # fc1 head
        out = jnp.dot(f1, fcow, preferred_element_type=f32) + fcob  # (1, OUT)
        o_ref[b:b + 1, :] = out


def csgnet_forward(params, xT, adjT):
    """xT: (B, Cin, N) node features (channels-leading); adjT: (B, N, N) = A^T."""
    batch = xT.shape[0]
    out_ch = params["fcob"].shape[1]
    return pl.pallas_call(
        _csgnet_fused_kernel,
        out_shape=jax.ShapeDtypeStruct((batch, out_ch), jnp.float32),
        in_specs=[VMEM] * 17,
        out_specs=VMEM,
    )(adjT, xT,
      params["wrelT"], params["wrootT"], params["brelT"],
      params["lngT"], params["lnbT"],
      params["gc1wT"], params["gc1bT"], params["gc2wT"], params["gc2bT"],
      params["fcw0"], params["fcb0"], params["fcw1"], params["fcb1"],
      params["fcow"], params["fcob"])


# ------------------------------ parameters --------------------------------- #

def init_params(key, *, in_channel, mid_channel, num_nodes,
                gc1_dim, gc2_dim, fc_dims, out_channel):
    """Build parameters in their natural (PyTorch-like) layout, then emit the
    kernel-ready layout: channels-leading transposes, eval-mode BN scale folded
    into weights/biases, and fc_w0 reshaped to channel-major (GC2, N, F0).
    All of this happens once at init — zero runtime cost."""
    ks = jax.random.split(key, 9)

    def kaiming(k, fan_out, shape):
        return jax.random.normal(k, shape, jnp.float32) * math.sqrt(2.0 / fan_out)

    s = jnp.float32(BN_EVAL_SCALE)

    # natural-layout parameters (weights stored [in, out])
    w_rel = kaiming(ks[0], mid_channel, (in_channel, mid_channel))
    w_root = kaiming(ks[1], mid_channel, (in_channel, mid_channel))
    b_rel = jnp.full((mid_channel,), 0.01, jnp.float32)
    ln_g = jnp.ones((num_nodes, mid_channel), jnp.float32)
    ln_b = jnp.zeros((num_nodes, mid_channel), jnp.float32)
    gc1_w = kaiming(ks[2], gc1_dim, (mid_channel, gc1_dim))
    gc1_b = jax.random.uniform(ks[3], (gc1_dim,), jnp.float32,
                               -1.0 / math.sqrt(mid_channel),
                               1.0 / math.sqrt(mid_channel))
    gc2_w = kaiming(ks[4], gc2_dim, (gc1_dim, gc2_dim))
    gc2_b = jax.random.uniform(ks[5], (gc2_dim,), jnp.float32,
                               -1.0 / math.sqrt(gc1_dim),
                               1.0 / math.sqrt(gc1_dim))
    flat = gc2_dim * num_nodes
    fc_w0 = kaiming(ks[6], fc_dims[0], (flat, fc_dims[0]))
    fc_b0 = jnp.full((fc_dims[0],), 0.01, jnp.float32)
    fc_w1 = kaiming(ks[7], fc_dims[1], (fc_dims[0], fc_dims[1]))
    fc_b1 = jnp.full((fc_dims[1],), 0.01, jnp.float32)
    fc1_w = kaiming(ks[8], out_channel, (fc_dims[1], out_channel))
    fc1_b = jnp.full((out_channel,), 0.01, jnp.float32)

    return {
        # GraphConv, channels-leading
        "wrelT": w_rel.T,                      # (mid, Cin)
        "wrootT": w_root.T,                    # (mid, Cin)
        "brelT": b_rel[:, None],               # (mid, 1)
        # LayerNorm affine, transposed to (mid, N)
        "lngT": ln_g.T,
        "lnbT": ln_b.T,
        # 1x1 convs with eval-mode BN scale folded in
        "gc1wT": gc1_w.T * s,                  # (GC1, mid)
        "gc1bT": gc1_b[:, None] * s,           # (GC1, 1)
        "gc2wT": gc2_w.T * s,                  # (GC2, GC1)
        "gc2bT": gc2_b[:, None] * s,           # (GC2, 1)
        # FC stack: fc_w0 rows are channel-major (c*N + n) -> reshape (GC2,N,F0)
        "fcw0": (fc_w0 * s).reshape(gc2_dim, num_nodes, fc_dims[0]),
        "fcb0": (fc_b0 * s)[None, :],          # (1, F0)
        "fcw1": fc_w1 * s,                     # (F0, F1)
        "fcb1": (fc_b1 * s)[None, :],          # (1, F1)
        # head (no BN)
        "fcow": fc1_w,                         # (F1, OUT)
        "fcob": fc1_b[None, :],                # (1, OUT)
    }


# --------------------------- pure-JAX reference ----------------------------- #

def reference_forward(params, xT, adjT):
    """Plain jnp re-implementation in the natural (node, channel) orientation,
    mirroring the PyTorch op order, used only for a sanity check."""
    batch = xT.shape[0]
    x = jnp.swapaxes(xT, 1, 2)                       # (B, N, Cin)
    adj = jnp.swapaxes(adjT, 1, 2)                   # (B, N, N), adj[i,j]: edge j->i
    w_rel = params["wrelT"].T
    w_root = params["wrootT"].T
    b_rel = params["brelT"].T                        # (1, mid)

    agg = jnp.einsum("bij,bjc->bic", adj, x)
    h = jnp.maximum(agg @ w_rel + x @ w_root + b_rel, 0.0)     # (B, N, mid)

    ln_g = params["lngT"].T
    ln_b = params["lnbT"].T
    mean = jnp.mean(h, axis=(1, 2), keepdims=True)
    var = jnp.mean(jnp.square(h - mean), axis=(1, 2), keepdims=True)
    h = (h - mean) * jax.lax.rsqrt(var + EPS_LN) * ln_g + ln_b

    h = jnp.maximum(h @ params["gc1wT"].T + params["gc1bT"][:, 0], 0.0)
    h = jnp.maximum(h @ params["gc2wT"].T + params["gc2bT"][:, 0], 0.0)  # (B,N,GC2)

    flat = jnp.swapaxes(h, 1, 2).reshape(batch, -1)            # channel-major
    w0 = params["fcw0"].reshape(-1, params["fcw0"].shape[-1])
    f = jnp.maximum(flat @ w0 + params["fcb0"], 0.0)
    f = jnp.maximum(f @ params["fcw1"] + params["fcb1"], 0.0)
    return f @ params["fcow"] + params["fcob"]


# --------------------------------- main ------------------------------------ #

if __name__ == "__main__":
    B = 2
    NUM_NODES = 16
    IN_CH = 1
    MID_CH = 16
    GC1 = 12            # global_conv1_dim = 4 * 3
    GC2 = 4             # global_conv2_dim
    FC_DIMS = (256, 64)  # channel_list tail: [GC2*num_nodes, 256, 64]
    OUT_CH = 1

    key = jax.random.PRNGKey(0)
    k_x, k_w, k_ew = jax.random.split(key, 3)

    # Node features, channels-leading: (B, Cin, N)
    xT = jax.random.normal(k_x, (B, IN_CH, NUM_NODES), jnp.float32)

    # Per-sample bidirectional ring graph with random edge weights, stored as a
    # batched TRANSPOSED dense adjacency: adjT[b, j, i] = weight of edge j -> i.
    local = jnp.arange(NUM_NODES)
    src = jnp.concatenate([local, (local + 1) % NUM_NODES])
    dst = jnp.concatenate([(local + 1) % NUM_NODES, local])
    edge_weight = jax.random.uniform(k_ew, (B, src.shape[0]), jnp.float32, 0.1, 1.0)
    adjT = jnp.zeros((B, NUM_NODES, NUM_NODES), jnp.float32).at[
        jnp.arange(B)[:, None], src[None, :], dst[None, :]].add(edge_weight)

    params = init_params(
        k_w, in_channel=IN_CH, mid_channel=MID_CH, num_nodes=NUM_NODES,
        gc1_dim=GC1, gc2_dim=GC2, fc_dims=FC_DIMS, out_channel=OUT_CH)

    fwd = jax.jit(csgnet_forward)
    out = jax.block_until_ready(fwd(params, xT, adjT))
    assert out.shape == (B, OUT_CH), out.shape

    ref = reference_forward(params, xT, adjT)
    assert jnp.all(jnp.isfinite(out))
    assert jnp.allclose(out, ref, rtol=2e-2, atol=2e-2), (out, ref)

    print("KERNEL_OK")
</pallas_src>

<mosaic_0001>
module attributes {stable_mosaic.version = 11 : i64} {
  func.func @_csgnet_fused_kernel(%arg0: memref<2x16x16xf32, #tpu.memory_space<vmem>>, %arg1: memref<2x1x16xf32, #tpu.memory_space<vmem>>, %arg2: memref<16x1xf32, #tpu.memory_space<vmem>>, %arg3: memref<16x1xf32, #tpu.memory_space<vmem>>, %arg4: memref<16x1xf32, #tpu.memory_space<vmem>>, %arg5: memref<16x16xf32, #tpu.memory_space<vmem>>, %arg6: memref<16x16xf32, #tpu.memory_space<vmem>>, %arg7: memref<12x16xf32, #tpu.memory_space<vmem>>, %arg8: memref<12x1xf32, #tpu.memory_space<vmem>>, %arg9: memref<4x12xf32, #tpu.memory_space<vmem>>, %arg10: memref<4x1xf32, #tpu.memory_space<vmem>>, %arg11: memref<4x16x256xf32, #tpu.memory_space<vmem>>, %arg12: memref<1x256xf32, #tpu.memory_space<vmem>>, %arg13: memref<256x64xf32, #tpu.memory_space<vmem>>, %arg14: memref<1x64xf32, #tpu.memory_space<vmem>>, %arg15: memref<64x1xf32, #tpu.memory_space<vmem>>, %arg16: memref<1x1xf32, #tpu.memory_space<vmem>>, %arg17: memref<2x1xf32, #tpu.memory_space<vmem>>) attributes {dimension_semantics = [], scalar_prefetch = 0 : i64, scratch_operands = 0 : i64, tpu.core_type = #tpu.core_type<tc>} {
    %c0 = arith.constant 0 : index
    %c0_0 = arith.constant 0 : index
    %0 = vector.load %arg2[%c0, %c0_0] : memref<16x1xf32, #tpu.memory_space<vmem>>, vector<16x1xf32>
    %c0_1 = arith.constant 0 : index
    %c0_2 = arith.constant 0 : index
    %1 = vector.load %arg3[%c0_1, %c0_2] : memref<16x1xf32, #tpu.memory_space<vmem>>, vector<16x1xf32>
    %c0_3 = arith.constant 0 : index
    %c0_4 = arith.constant 0 : index
    %2 = vector.load %arg4[%c0_3, %c0_4] : memref<16x1xf32, #tpu.memory_space<vmem>>, vector<16x1xf32>
    %c0_5 = arith.constant 0 : index
    %c0_6 = arith.constant 0 : index
    %3 = vector.load %arg5[%c0_5, %c0_6] : memref<16x16xf32, #tpu.memory_space<vmem>>, vector<16x16xf32>
    %c0_7 = arith.constant 0 : index
    %c0_8 = arith.constant 0 : index
    %4 = vector.load %arg6[%c0_7, %c0_8] : memref<16x16xf32, #tpu.memory_space<vmem>>, vector<16x16xf32>
    %c0_9 = arith.constant 0 : index
    %c0_10 = arith.constant 0 : index
    %5 = vector.load %arg7[%c0_9, %c0_10] : memref<12x16xf32, #tpu.memory_space<vmem>>, vector<12x16xf32>
    %c0_11 = arith.constant 0 : index
    %c0_12 = arith.constant 0 : index
    %6 = vector.load %arg8[%c0_11, %c0_12] : memref<12x1xf32, #tpu.memory_space<vmem>>, vector<12x1xf32>
    %c0_13 = arith.constant 0 : index
    %c0_14 = arith.constant 0 : index
    %7 = vector.load %arg9[%c0_13, %c0_14] : memref<4x12xf32, #tpu.memory_space<vmem>>, vector<4x12xf32>
    %c0_15 = arith.constant 0 : index
    %c0_16 = arith.constant 0 : index
    %8 = vector.load %arg10[%c0_15, %c0_16] : memref<4x1xf32, #tpu.memory_space<vmem>>, vector<4x1xf32>
    %c0_17 = arith.constant 0 : index
    %c0_18 = arith.constant 0 : index
    %9 = vector.load %arg12[%c0_17, %c0_18] : memref<1x256xf32, #tpu.memory_space<vmem>>, vector<1x256xf32>
    %c0_19 = arith.constant 0 : index
    %c0_20 = arith.constant 0 : index
    %10 = vector.load %arg13[%c0_19, %c0_20] : memref<256x64xf32, #tpu.memory_space<vmem>>, vector<256x64xf32>
    %c0_21 = arith.constant 0 : index
    %c0_22 = arith.constant 0 : index
    %11 = vector.load %arg14[%c0_21, %c0_22] : memref<1x64xf32, #tpu.memory_space<vmem>>, vector<1x64xf32>
    %c0_23 = arith.constant 0 : index
    %c0_24 = arith.constant 0 : index
    %12 = vector.load %arg15[%c0_23, %c0_24] : memref<64x1xf32, #tpu.memory_space<vmem>>, vector<64x1xf32>
    %c0_25 = arith.constant 0 : index
    %c0_26 = arith.constant 0 : index
    %13 = vector.load %arg16[%c0_25, %c0_26] : memref<1x1xf32, #tpu.memory_space<vmem>>, vector<1x1xf32>
    %c0_27 = arith.constant 0 : index
    %c0_28 = arith.constant 0 : index
    %c0_29 = arith.constant 0 : index
    %14 = vector.load %arg1[%c0_27, %c0_28, %c0_29] : memref<2x1x16xf32, #tpu.memory_space<vmem>>, vector<1x1x16xf32>
    %15 = vector.shape_cast %14 : vector<1x1x16xf32> to vector<1x16xf32>
    %c0_30 = arith.constant 0 : index
    %c0_31 = arith.constant 0 : index
    %c0_32 = arith.constant 0 : index
    %16 = vector.load %arg0[%c0_30, %c0_31, %c0_32] : memref<2x16x16xf32, #tpu.memory_space<vmem>>, vector<1x16x16xf32>
    %17 = vector.shape_cast %16 : vector<1x16x16xf32> to vector<16x16xf32>
    %cst = arith.constant dense<0.000000e+00> : vector<16x16xf32>
    %18 = tpu.matmul %0, %15, %cst {dimension_numbers = #tpu.dot_dimension_numbers<[1], [0], [0], [1], [0, 0, 1, 1], [], []>} : vector<16x1xf32>, vector<1x16xf32>, vector<16x16xf32> -> vector<16x16xf32>
    %cst_33 = arith.constant dense<0.000000e+00> : vector<16x16xf32>
    %19 = tpu.matmul %18, %17, %cst_33 {dimension_numbers = #tpu.dot_dimension_numbers<[1], [0], [0], [1], [0, 0, 1, 1], [], []>} : vector<16x16xf32>, vector<16x16xf32>, vector<16x16xf32> -> vector<16x16xf32>
    %cst_34 = arith.constant dense<0.000000e+00> : vector<16x16xf32>
    %20 = tpu.matmul %1, %15, %cst_34 {dimension_numbers = #tpu.dot_dimension_numbers<[1], [0], [0], [1], [0, 0, 1, 1], [], []>} : vector<16x1xf32>, vector<1x16xf32>, vector<16x16xf32> -> vector<16x16xf32>
    %21 = arith.addf %19, %20 : vector<16x16xf32>
    %22 = vector.broadcast %2 : vector<16x1xf32> to vector<16x16xf32>
    %23 = arith.addf %21, %22 : vector<16x16xf32>
    %cst_35 = arith.constant 0.000000e+00 : f32
    %24 = vector.broadcast %cst_35 : f32 to vector<16x16xf32>
    %25 = arith.maximumf %23, %24 : vector<16x16xf32>
    %26 = vector.shape_cast %25 : vector<16x16xf32> to vector<1x16x16xf32>
    %cst_36 = arith.constant dense<0.000000e+00> : vector<1xf32>
    %27 = vector.multi_reduction <add>, %26, %cst_36 [1, 2] : vector<1x16x16xf32> to vector<1xf32>
    %28 = vector.shape_cast %27 : vector<1xf32> to vector<1x1x1xf32>
    %29 = vector.extract %28[0, 0, 0] : f32 from vector<1x1x1xf32>
    %30 = vector.broadcast %29 : f32 to vector<1x1xf32>
    %cst_37 = arith.constant 2.560000e+02 : f32
    %31 = vector.broadcast %cst_37 : f32 to vector<1x1xf32>
    %32 = arith.divf %30, %31 : vector<1x1xf32>
    %33 = vector.broadcast %32 : vector<1x1xf32> to vector<16x16xf32>
    %34 = arith.subf %25, %33 : vector<16x16xf32>
    %35 = arith.mulf %34, %34 : vector<16x16xf32>
    %36 = vector.shape_cast %35 : vector<16x16xf32> to vector<1x16x16xf32>
    %cst_38 = arith.constant dense<0.000000e+00> : vector<1xf32>
    %37 = vector.multi_reduction <add>, %36, %cst_38 [1, 2] : vector<1x16x16xf32> to vector<1xf32>
    %38 = vector.shape_cast %37 : vector<1xf32> to vector<1x1x1xf32>
    %39 = vector.extract %38[0, 0, 0] : f32 from vector<1x1x1xf32>
    %40 = vector.broadcast %39 : f32 to vector<1x1xf32>
    %cst_39 = arith.constant 2.560000e+02 : f32
    %41 = vector.broadcast %cst_39 : f32 to vector<1x1xf32>
    %42 = arith.divf %40, %41 : vector<1x1xf32>
    %43 = vector.broadcast %32 : vector<1x1xf32> to vector<16x16xf32>
    %44 = arith.subf %25, %43 : vector<16x16xf32>
    %cst_40 = arith.constant 9.99999974E-6 : f32
    %45 = vector.broadcast %cst_40 : f32 to vector<1x1xf32>
    %46 = arith.addf %42, %45 : vector<1x1xf32>
    %47 = math.rsqrt %46 : vector<1x1xf32>
    %48 = vector.broadcast %47 : vector<1x1xf32> to vector<16x16xf32>
    %49 = arith.mulf %44, %48 : vector<16x16xf32>
    %50 = arith.mulf %49, %3 : vector<16x16xf32>
    %51 = arith.addf %50, %4 : vector<16x16xf32>
    %cst_41 = arith.constant dense<0.000000e+00> : vector<12x16xf32>
    %52 = tpu.matmul %5, %51, %cst_41 {dimension_numbers = #tpu.dot_dimension_numbers<[1], [0], [0], [1], [0, 0, 1, 1], [], []>} : vector<12x16xf32>, vector<16x16xf32>, vector<12x16xf32> -> vector<12x16xf32>
    %53 = vector.broadcast %6 : vector<12x1xf32> to vector<12x16xf32>
    %54 = arith.addf %52, %53 : vector<12x16xf32>
    %cst_42 = arith.constant 0.000000e+00 : f32
    %55 = vector.broadcast %cst_42 : f32 to vector<12x16xf32>
    %56 = arith.maximumf %54, %55 : vector<12x16xf32>
    %cst_43 = arith.constant dense<0.000000e+00> : vector<4x16xf32>
    %57 = tpu.matmul %7, %56, %cst_43 {dimension_numbers = #tpu.dot_dimension_numbers<[1], [0], [0], [1], [0, 0, 1, 1], [], []>} : vector<4x12xf32>, vector<12x16xf32>, vector<4x16xf32> -> vector<4x16xf32>
    %58 = vector.broadcast %8 : vector<4x1xf32> to vector<4x16xf32>
    %59 = arith.addf %57, %58 : vector<4x16xf32>
    %cst_44 = arith.constant 0.000000e+00 : f32
    %60 = vector.broadcast %cst_44 : f32 to vector<4x16xf32>
    %61 = arith.maximumf %59, %60 : vector<4x16xf32>
    %62 = vector.extract_strided_slice %61 {offsets = [0, 0], sizes = [1, 16], strides = [1, 1]} : vector<4x16xf32> to vector<1x16xf32>
    %c0_45 = arith.constant 0 : index
    %c0_46 = arith.constant 0 : index
    %c0_47 = arith.constant 0 : index
    %63 = vector.load %arg11[%c0_45, %c0_46, %c0_47] : memref<4x16x256xf32, #tpu.memory_space<vmem>>, vector<1x16x256xf32>
    %64 = vector.shape_cast %63 : vector<1x16x256xf32> to vector<16x256xf32>
    %cst_48 = arith.constant dense<0.000000e+00> : vector<1x256xf32>
    %65 = tpu.matmul %62, %64, %cst_48 {dimension_numbers = #tpu.dot_dimension_numbers<[1], [0], [0], [1], [0, 0, 1, 1], [], []>} : vector<1x16xf32>, vector<16x256xf32>, vector<1x256xf32> -> vector<1x256xf32>
    %66 = arith.addf %9, %65 : vector<1x256xf32>
    %67 = vector.extract_strided_slice %61 {offsets = [1, 0], sizes = [1, 16], strides = [1, 1]} : vector<4x16xf32> to vector<1x16xf32>
    %c1 = arith.constant 1 : index
    %c0_49 = arith.constant 0 : index
    %c0_50 = arith.constant 0 : index
    %68 = vector.load %arg11[%c1, %c0_49, %c0_50] : memref<4x16x256xf32, #tpu.memory_space<vmem>>, vector<1x16x256xf32>
    %69 = vector.shape_cast %68 : vector<1x16x256xf32> to vector<16x256xf32>
    %cst_51 = arith.constant dense<0.000000e+00> : vector<1x256xf32>
    %70 = tpu.matmul %67, %69, %cst_51 {dimension_numbers = #tpu.dot_dimension_numbers<[1], [0], [0], [1], [0, 0, 1, 1], [], []>} : vector<1x16xf32>, vector<16x256xf32>, vector<1x256xf32> -> vector<1x256xf32>
    %71 = arith.addf %66, %70 : vector<1x256xf32>
    %72 = vector.extract_strided_slice %61 {offsets = [2, 0], sizes = [1, 16], strides = [1, 1]} : vector<4x16xf32> to vector<1x16xf32>
    %c2 = arith.constant 2 : index
    %c0_52 = arith.constant 0 : index
    %c0_53 = arith.constant 0 : index
    %73 = vector.load %arg11[%c2, %c0_52, %c0_53] : memref<4x16x256xf32, #tpu.memory_space<vmem>>, vector<1x16x256xf32>
    %74 = vector.shape_cast %73 : vector<1x16x256xf32> to vector<16x256xf32>
    %cst_54 = arith.constant dense<0.000000e+00> : vector<1x256xf32>
    %75 = tpu.matmul %72, %74, %cst_54 {dimension_numbers = #tpu.dot_dimension_numbers<[1], [0], [0], [1], [0, 0, 1, 1], [], []>} : vector<1x16xf32>, vector<16x256xf32>, vector<1x256xf32> -> vector<1x256xf32>
    %76 = arith.addf %71, %75 : vector<1x256xf32>
    %77 = vector.extract_strided_slice %61 {offsets = [3, 0], sizes = [1, 16], strides = [1, 1]} : vector<4x16xf32> to vector<1x16xf32>
    %c3 = arith.constant 3 : index
    %c0_55 = arith.constant 0 : index
    %c0_56 = arith.constant 0 : index
    %78 = vector.load %arg11[%c3, %c0_55, %c0_56] : memref<4x16x256xf32, #tpu.memory_space<vmem>>, vector<1x16x256xf32>
    %79 = vector.shape_cast %78 : vector<1x16x256xf32> to vector<16x256xf32>
    %cst_57 = arith.constant dense<0.000000e+00> : vector<1x256xf32>
    %80 = tpu.matmul %77, %79, %cst_57 {dimension_numbers = #tpu.dot_dimension_numbers<[1], [0], [0], [1], [0, 0, 1, 1], [], []>} : vector<1x16xf32>, vector<16x256xf32>, vector<1x256xf32> -> vector<1x256xf32>
    %81 = arith.addf %76, %80 : vector<1x256xf32>
    %cst_58 = arith.constant 0.000000e+00 : f32
    %82 = vector.broadcast %cst_58 : f32 to vector<1x256xf32>
    %83 = arith.maximumf %81, %82 : vector<1x256xf32>
    %cst_59 = arith.constant dense<0.000000e+00> : vector<1x64xf32>
    %84 = tpu.matmul %83, %10, %cst_59 {dimension_numbers = #tpu.dot_dimension_numbers<[1], [0], [0], [1], [0, 0, 1, 1], [], []>} : vector<1x256xf32>, vector<256x64xf32>, vector<1x64xf32> -> vector<1x64xf32>
    %85 = arith.addf %84, %11 : vector<1x64xf32>
    %cst_60 = arith.constant 0.000000e+00 : f32
    %86 = vector.broadcast %cst_60 : f32 to vector<1x64xf32>
    %87 = arith.maximumf %85, %86 : vector<1x64xf32>
    %cst_61 = arith.constant dense<0.000000e+00> : vector<1x1xf32>
    %88 = tpu.matmul %87, %12, %cst_61 {dimension_numbers = #tpu.dot_dimension_numbers<[1], [0], [0], [1], [0, 0, 1, 1], [], []>} : vector<1x64xf32>, vector<64x1xf32>, vector<1x1xf32> -> vector<1x1xf32>
    %89 = arith.addf %88, %13 : vector<1x1xf32>
    %c0_62 = arith.constant 0 : index
    %c0_63 = arith.constant 0 : index
    %90 = vector.load %arg17[%c0_62, %c0_63] : memref<2x1xf32, #tpu.memory_space<vmem>>, vector<1x1xf32>
    tpu.vector_store %arg17[%c0_62, %c0_63], %89 {strides = array<i32>} : memref<2x1xf32, #tpu.memory_space<vmem>>, vector<1x1xf32>,
    %c1_64 = arith.constant 1 : index
    %c0_65 = arith.constant 0 : index
    %c0_66 = arith.constant 0 : index
    %91 = vector.load %arg1[%c1_64, %c0_65, %c0_66] : memref<2x1x16xf32, #tpu.memory_space<vmem>>, vector<1x1x16xf32>
    %92 = vector.shape_cast %91 : vector<1x1x16xf32> to vector<1x16xf32>
    %c1_67 = arith.constant 1 : index
    %c0_68 = arith.constant 0 : index
    %c0_69 = arith.constant 0 : index
    %93 = vector.load %arg0[%c1_67, %c0_68, %c0_69] : memref<2x16x16xf32, #tpu.memory_space<vmem>>, vector<1x16x16xf32>
    %94 = vector.shape_cast %93 : vector<1x16x16xf32> to vector<16x16xf32>
    %cst_70 = arith.constant dense<0.000000e+00> : vector<16x16xf32>
    %95 = tpu.matmul %0, %92, %cst_70 {dimension_numbers = #tpu.dot_dimension_numbers<[1], [0], [0], [1], [0, 0, 1, 1], [], []>} : vector<16x1xf32>, vector<1x16xf32>, vector<16x16xf32> -> vector<16x16xf32>
    %cst_71 = arith.constant dense<0.000000e+00> : vector<16x16xf32>
    %96 = tpu.matmul %95, %94, %cst_71 {dimension_numbers = #tpu.dot_dimension_numbers<[1], [0], [0], [1], [0, 0, 1, 1], [], []>} : vector<16x16xf32>, vector<16x16xf32>, vector<16x16xf32> -> vector<16x16xf32>
    %cst_72 = arith.constant dense<0.000000e+00> : vector<16x16xf32>
    %97 = tpu.matmul %1, %92, %cst_72 {dimension_numbers = #tpu.dot_dimension_numbers<[1], [0], [0], [1], [0, 0, 1, 1], [], []>} : vector<16x1xf32>, vector<1x16xf32>, vector<16x16xf32> -> vector<16x16xf32>
    %98 = arith.addf %96, %97 : vector<16x16xf32>
    %99 = vector.broadcast %2 : vector<16x1xf32> to vector<16x16xf32>
    %100 = arith.addf %98, %99 : vector<16x16xf32>
    %cst_73 = arith.constant 0.000000e+00 : f32
    %101 = vector.broadcast %cst_73 : f32 to vector<16x16xf32>
    %102 = arith.maximumf %100, %101 : vector<16x16xf32>
    %103 = vector.shape_cast %102 : vector<16x16xf32> to vector<1x16x16xf32>
    %cst_74 = arith.constant dense<0.000000e+00> : vector<1xf32>
    %104 = vector.multi_reduction <add>, %103, %cst_74 [1, 2] : vector<1x16x16xf32> to vector<1xf32>
    %105 = vector.shape_cast %104 : vector<1xf32> to vector<1x1x1xf32>
    %106 = vector.extract %105[0, 0, 0] : f32 from vector<1x1x1xf32>
    %107 = vector.broadcast %106 : f32 to vector<1x1xf32>
    %cst_75 = arith.constant 2.560000e+02 : f32
    %108 = vector.broadcast %cst_75 : f32 to vector<1x1xf32>
    %109 = arith.divf %107, %108 : vector<1x1xf32>
    %110 = vector.broadcast %109 : vector<1x1xf32> to vector<16x16xf32>
    %111 = arith.subf %102, %110 : vector<16x16xf32>
    %112 = arith.mulf %111, %111 : vector<16x16xf32>
    %113 = vector.shape_cast %112 : vector<16x16xf32> to vector<1x16x16xf32>
    %cst_76 = arith.constant dense<0.000000e+00> : vector<1xf32>
    %114 = vector.multi_reduction <add>, %113, %cst_76 [1, 2] : vector<1x16x16xf32> to vector<1xf32>
    %115 = vector.shape_cast %114 : vector<1xf32> to vector<1x1x1xf32>
    %116 = vector.extract %115[0, 0, 0] : f32 from vector<1x1x1xf32>
    %117 = vector.broadcast %116 : f32 to vector<1x1xf32>
    %cst_77 = arith.constant 2.560000e+02 : f32
    %118 = vector.broadcast %cst_77 : f32 to vector<1x1xf32>
    %119 = arith.divf %117, %118 : vector<1x1xf32>
    %120 = vector.broadcast %109 : vector<1x1xf32> to vector<16x16xf32>
    %121 = arith.subf %102, %120 : vector<16x16xf32>
    %cst_78 = arith.constant 9.99999974E-6 : f32
    %122 = vector.broadcast %cst_78 : f32 to vector<1x1xf32>
    %123 = arith.addf %119, %122 : vector<1x1xf32>
    %124 = math.rsqrt %123 : vector<1x1xf32>
    %125 = vector.broadcast %124 : vector<1x1xf32> to vector<16x16xf32>
    %126 = arith.mulf %121, %125 : vector<16x16xf32>
    %127 = arith.mulf %126, %3 : vector<16x16xf32>
    %128 = arith.addf %127, %4 : vector<16x16xf32>
    %cst_79 = arith.constant dense<0.000000e+00> : vector<12x16xf32>
    %129 = tpu.matmul %5, %128, %cst_79 {dimension_numbers = #tpu.dot_dimension_numbers<[1], [0], [0], [1], [0, 0, 1, 1], [], []>} : vector<12x16xf32>, vector<16x16xf32>, vector<12x16xf32> -> vector<12x16xf32>
    %130 = vector.broadcast %6 : vector<12x1xf32> to vector<12x16xf32>
    %131 = arith.addf %129, %130 : vector<12x16xf32>
    %cst_80 = arith.constant 0.000000e+00 : f32
    %132 = vector.broadcast %cst_80 : f32 to vector<12x16xf32>
    %133 = arith.maximumf %131, %132 : vector<12x16xf32>
    %cst_81 = arith.constant dense<0.000000e+00> : vector<4x16xf32>
    %134 = tpu.matmul %7, %133, %cst_81 {dimension_numbers = #tpu.dot_dimension_numbers<[1], [0], [0], [1], [0, 0, 1, 1], [], []>} : vector<4x12xf32>, vector<12x16xf32>, vector<4x16xf32> -> vector<4x16xf32>
    %135 = vector.broadcast %8 : vector<4x1xf32> to vector<4x16xf32>
    %136 = arith.addf %134, %135 : vector<4x16xf32>
    %cst_82 = arith.constant 0.000000e+00 : f32
    %137 = vector.broadcast %cst_82 : f32 to vector<4x16xf32>
    %138 = arith.maximumf %136, %137 : vector<4x16xf32>
    %139 = vector.extract_strided_slice %138 {offsets = [0, 0], sizes = [1, 16], strides = [1, 1]} : vector<4x16xf32> to vector<1x16xf32>
    %c0_83 = arith.constant 0 : index
    %c0_84 = arith.constant 0 : index
    %c0_85 = arith.constant 0 : index
    %140 = vector.load %arg11[%c0_83, %c0_84, %c0_85] : memref<4x16x256xf32, #tpu.memory_space<vmem>>, vector<1x16x256xf32>
    %141 = vector.shape_cast %140 : vector<1x16x256xf32> to vector<16x256xf32>
    %cst_86 = arith.constant dense<0.000000e+00> : vector<1x256xf32>
    %142 = tpu.matmul %139, %141, %cst_86 {dimension_numbers = #tpu.dot_dimension_numbers<[1], [0], [0], [1], [0, 0, 1, 1], [], []>} : vector<1x16xf32>, vector<16x256xf32>, vector<1x256xf32> -> vector<1x256xf32>
    %143 = arith.addf %9, %142 : vector<1x256xf32>
    %144 = vector.extract_strided_slice %138 {offsets = [1, 0], sizes = [1, 16], strides = [1, 1]} : vector<4x16xf32> to vector<1x16xf32>
    %c1_87 = arith.constant 1 : index
    %c0_88 = arith.constant 0 : index
    %c0_89 = arith.constant 0 : index
    %145 = vector.load %arg11[%c1_87, %c0_88, %c0_89] : memref<4x16x256xf32, #tpu.memory_space<vmem>>, vector<1x16x256xf32>
    %146 = vector.shape_cast %145 : vector<1x16x256xf32> to vector<16x256xf32>
    %cst_90 = arith.constant dense<0.000000e+00> : vector<1x256xf32>
    %147 = tpu.matmul %144, %146, %cst_90 {dimension_numbers = #tpu.dot_dimension_numbers<[1], [0], [0], [1], [0, 0, 1, 1], [], []>} : vector<1x16xf32>, vector<16x256xf32>, vector<1x256xf32> -> vector<1x256xf32>
    %148 = arith.addf %143, %147 : vector<1x256xf32>
    %149 = vector.extract_strided_slice %138 {offsets = [2, 0], sizes = [1, 16], strides = [1, 1]} : vector<4x16xf32> to vector<1x16xf32>
    %c2_91 = arith.constant 2 : index
    %c0_92 = arith.constant 0 : index
    %c0_93 = arith.constant 0 : index
    %150 = vector.load %arg11[%c2_91, %c0_92, %c0_93] : memref<4x16x256xf32, #tpu.memory_space<vmem>>, vector<1x16x256xf32>
    %151 = vector.shape_cast %150 : vector<1x16x256xf32> to vector<16x256xf32>
    %cst_94 = arith.constant dense<0.000000e+00> : vector<1x256xf32>
    %152 = tpu.matmul %149, %151, %cst_94 {dimension_numbers = #tpu.dot_dimension_numbers<[1], [0], [0], [1], [0, 0, 1, 1], [], []>} : vector<1x16xf32>, vector<16x256xf32>, vector<1x256xf32> -> vector<1x256xf32>
    %153 = arith.addf %148, %152 : vector<1x256xf32>
    %154 = vector.extract_strided_slice %138 {offsets = [3, 0], sizes = [1, 16], strides = [1, 1]} : vector<4x16xf32> to vector<1x16xf32>
    %c3_95 = arith.constant 3 : index
    %c0_96 = arith.constant 0 : index
    %c0_97 = arith.constant 0 : index
    %155 = vector.load %arg11[%c3_95, %c0_96, %c0_97] : memref<4x16x256xf32, #tpu.memory_space<vmem>>, vector<1x16x256xf32>
    %156 = vector.shape_cast %155 : vector<1x16x256xf32> to vector<16x256xf32>
    %cst_98 = arith.constant dense<0.000000e+00> : vector<1x256xf32>
    %157 = tpu.matmul %154, %156, %cst_98 {dimension_numbers = #tpu.dot_dimension_numbers<[1], [0], [0], [1], [0, 0, 1, 1], [], []>} : vector<1x16xf32>, vector<16x256xf32>, vector<1x256xf32> -> vector<1x256xf32>
    %158 = arith.addf %153, %157 : vector<1x256xf32>
    %cst_99 = arith.constant 0.000000e+00 : f32
    %159 = vector.broadcast %cst_99 : f32 to vector<1x256xf32>
    %160 = arith.maximumf %158, %159 : vector<1x256xf32>
    %cst_100 = arith.constant dense<0.000000e+00> : vector<1x64xf32>
    %161 = tpu.matmul %160, %10, %cst_100 {dimension_numbers = #tpu.dot_dimension_numbers<[1], [0], [0], [1], [0, 0, 1, 1], [], []>} : vector<1x256xf32>, vector<256x64xf32>, vector<1x64xf32> -> vector<1x64xf32>
    %162 = arith.addf %161, %11 : vector<1x64xf32>
    %cst_101 = arith.constant 0.000000e+00 : f32
    %163 = vector.broadcast %cst_101 : f32 to vector<1x64xf32>
    %164 = arith.maximumf %162, %163 : vector<1x64xf32>
    %cst_102 = arith.constant dense<0.000000e+00> : vector<1x1xf32>
    %165 = tpu.matmul %164, %12, %cst_102 {dimension_numbers = #tpu.dot_dimension_numbers<[1], [0], [0], [1], [0, 0, 1, 1], [], []>} : vector<1x64xf32>, vector<64x1xf32>, vector<1x1xf32> -> vector<1x1xf32>
    %166 = arith.addf %165, %13 : vector<1x1xf32>
    %c1_103 = arith.constant 1 : index
    %c0_104 = arith.constant 0 : index
    %167 = vector.load %arg17[%c1_103, %c0_104] : memref<2x1xf32, #tpu.memory_space<vmem>>, vector<1x1xf32>
    tpu.vector_store %arg17[%c1_103, %c0_104], %166 {strides = array<i32>} : memref<2x1xf32, #tpu.memory_space<vmem>>, vector<1x1xf32>,
    return
  }
}

</mosaic_0001>

<llo_original>
// kernel: csgnet_forward.1
$region0: #{csgnet_forward.1}
  #allocation0 [shape = 'u32[]', space=smem, size = 0x4, offset = 0x4, fixed_abs, tag = 'smem constant byte address 0x4 - core index']
  #allocation1 [shape = 'u32[144,128]{1,0:T(1,128)}', space=vmem, size = 0x12000, scoped, tag = 'internal scratch']
  #allocation2 [shape = 'f32[1,1]{1,0:T(1,128)S(1)}', space=vmem, size = 0x200, scoped, tag = 'scoped memory for csgnet_forward.1']
  %s0 = inlined_call_operand.vmem [shape: f32[2,16,16], index: 0, kind: input, shape index: {}]
  %s1 = inlined_call_operand.vmem [shape: f32[2,1,16], index: 1, kind: input, shape index: {}]
  %s2 = inlined_call_operand.vmem [shape: f32[16,1], index: 2, kind: input, shape index: {}]
  %s3 = inlined_call_operand.vmem [shape: f32[16,1], index: 3, kind: input, shape index: {}]
  %s4 = inlined_call_operand.vmem [shape: f32[16,1], index: 4, kind: input, shape index: {}]
  %s5 = inlined_call_operand.vmem [shape: f32[16,16], index: 5, kind: input, shape index: {}]
  %s6 = inlined_call_operand.vmem [shape: f32[16,16], index: 6, kind: input, shape index: {}]
  %s7 = inlined_call_operand.vmem [shape: f32[12,16], index: 7, kind: input, shape index: {}]
  %s8 = inlined_call_operand.vmem [shape: f32[12,1], index: 8, kind: input, shape index: {}]
  %s9 = inlined_call_operand.vmem [shape: f32[4,12], index: 9, kind: input, shape index: {}]
  %s10 = inlined_call_operand.vmem [shape: f32[4,1], index: 10, kind: input, shape index: {}]
  %s11 = inlined_call_operand.vmem [shape: f32[4,16,256], index: 11, kind: input, shape index: {}]
  %s12 = inlined_call_operand.vmem [shape: f32[1,256], index: 12, kind: input, shape index: {}]
  %s13 = inlined_call_operand.vmem [shape: f32[256,64], index: 13, kind: input, shape index: {}]
  %s14 = inlined_call_operand.vmem [shape: f32[1,64], index: 14, kind: input, shape index: {}]
  %s15 = inlined_call_operand.vmem [shape: f32[64,1], index: 15, kind: input, shape index: {}]
  %s16 = inlined_call_operand.<no memory space> [shape: f32[1,1], index: 16, kind: input, shape index: {}]
  %s17 = inlined_call_operand.vmem [shape: f32[2,1], index: 17, kind: output, shape index: {}]
  %s18 = sld [smem:[#allocation0]]
  $region78: #{csgnet_forward.1} parent=0
    _
  %s20 = ssub.s32 1, %s18
  %s21 = scalar_select 0, %s20, %s18
  %v22 = vstv %s16
  %23 = vst [vmem:[#allocation2] sm:$0x1] %v22
  // Predicated region
  $region2: #{csgnet_forward.1} parent=0 // pred_check
    _
  $region3: #{csgnet_forward.1} parent=0 // pred_check_branch
    %25 = sbr.rel (0) target = $region5
  $region4: #{csgnet_forward.1} parent=0 // pred_region
    _
  $region5: #{csgnet_forward.1} parent=0 // pred_fallthru
    _
  // Predicated region
  $region6: #{csgnet_forward.1} parent=0 // pred_check
    _
  $region7: #{csgnet_forward.1} parent=0 // pred_check_branch
    %27 = sbr.rel (0) target = $region9
  $region8: #{csgnet_forward.1} parent=0 // pred_region
    _
  $region9: #{csgnet_forward.1} parent=0 // pred_fallthru
    _
  // Predicated region
  $region10: #{csgnet_forward.1} parent=0 // pred_check
    _
  $region11: #{csgnet_forward.1} parent=0 // pred_check_branch
    %29 = sbr.rel (0) target = $region13
  $region12: #{csgnet_forward.1} parent=0 // pred_region
    _
  $region13: #{csgnet_forward.1} parent=0 // pred_fallthru
    _
  // Predicated region
  $region14: #{csgnet_forward.1} parent=0 // pred_check
    _
  $region15: #{csgnet_forward.1} parent=0 // pred_check_branch
    %31 = sbr.rel (0) target = $region17
  $region16: #{csgnet_forward.1} parent=0 // pred_region
    _
  $region17: #{csgnet_forward.1} parent=0 // pred_fallthru
    _
  // Predicated region
  $region18: #{csgnet_forward.1} parent=0 // pred_check
    _
  $region19: #{csgnet_forward.1} parent=0 // pred_check_branch
    %33 = sbr.rel (0) target = $region21
  $region20: #{csgnet_forward.1} parent=0 // pred_region
    _
  $region21: #{csgnet_forward.1} parent=0 // pred_fallthru
    _
  // Predicated region
  $region22: #{csgnet_forward.1} parent=0 // pred_check
    _
  $region23: #{csgnet_forward.1} parent=0 // pred_check_branch
    %35 = sbr.rel (0) target = $region25
  $region24: #{csgnet_forward.1} parent=0 // pred_region
    _
  $region25: #{csgnet_forward.1} parent=0 // pred_fallthru
    _
  // Predicated region
  $region26: #{csgnet_forward.1} parent=0 // pred_check
    _
  $region27: #{csgnet_forward.1} parent=0 // pred_check_branch
    %37 = sbr.rel (0) target = $region29
  $region28: #{csgnet_forward.1} parent=0 // pred_region
    _
  $region29: #{csgnet_forward.1} parent=0 // pred_fallthru
    _
  // Predicated region
  $region30: #{csgnet_forward.1} parent=0 // pred_check
    _
  $region31: #{csgnet_forward.1} parent=0 // pred_check_branch
    %39 = sbr.rel (0) target = $region33
  $region32: #{csgnet_forward.1} parent=0 // pred_region
    _
  $region33: #{csgnet_forward.1} parent=0 // pred_fallthru
    _
  // Predicated region
  $region34: #{csgnet_forward.1} parent=0 // pred_check
    _
  $region35: #{csgnet_forward.1} parent=0 // pred_check_branch
    %41 = sbr.rel (0) target = $region37
  $region36: #{csgnet_forward.1} parent=0 // pred_region
    _
  $region37: #{csgnet_forward.1} parent=0 // pred_fallthru
    _
  // Predicated region
  $region38: #{csgnet_forward.1} parent=0 // pred_check
    _
  $region39: #{csgnet_forward.1} parent=0 // pred_check_branch
    %43 = sbr.rel (0) target = $region41
  $region40: #{csgnet_forward.1} parent=0 // pred_region
    _
  $region41: #{csgnet_forward.1} parent=0 // pred_fallthru
    _
  // Predicated region
  $region42: #{csgnet_forward.1} parent=0 // pred_check
    _
  $region43: #{csgnet_forward.1} parent=0 // pred_check_branch
    %45 = sbr.rel (0) target = $region45
  $region44: #{csgnet_forward.1} parent=0 // pred_region
    _
  $region45: #{csgnet_forward.1} parent=0 // pred_fallthru
    _
  // Predicated region
  $region46: #{csgnet_forward.1} parent=0 // pred_check
    _
  $region47: #{csgnet_forward.1} parent=0 // pred_check_branch
    %47 = sbr.rel (0) target = $region49
  $region48: #{csgnet_forward.1} parent=0 // pred_region
    _
  $region49: #{csgnet_forward.1} parent=0 // pred_fallthru
    _
  // Predicated region
  $region50: #{csgnet_forward.1} parent=0 // pred_check
    _
  $region51: #{csgnet_forward.1} parent=0 // pred_check_branch
    %49 = sbr.rel (0) target = $region53
  $region52: #{csgnet_forward.1} parent=0 // pred_region
    _
  $region53: #{csgnet_forward.1} parent=0 // pred_fallthru
    _
  // Predicated region
  $region54: #{csgnet_forward.1} parent=0 // pred_check
    _
  $region55: #{csgnet_forward.1} parent=0 // pred_check_branch
    %51 = sbr.rel (0) target = $region57
  $region56: #{csgnet_forward.1} parent=0 // pred_region
    _
  $region57: #{csgnet_forward.1} parent=0 // pred_fallthru
    _
  // Predicated region
  $region58: #{csgnet_forward.1} parent=0 // pred_check
    _
  $region59: #{csgnet_forward.1} parent=0 // pred_check_branch
    %53 = sbr.rel (0) target = $region61
  $region60: #{csgnet_forward.1} parent=0 // pred_region
    _
  $region61: #{csgnet_forward.1} parent=0 // pred_fallthru
    _
  // Predicated region
  $region62: #{csgnet_forward.1} parent=0 // pred_check
    _
  $region63: #{csgnet_forward.1} parent=0 // pred_check_branch
    %55 = sbr.rel (0) target = $region65
  $region64: #{csgnet_forward.1} parent=0 // pred_region
    _
  $region65: #{csgnet_forward.1} parent=0 // pred_fallthru
    _
  // Predicated region
  $region66: #{csgnet_forward.1} parent=0 // pred_check
    _
  $region67: #{csgnet_forward.1} parent=0 // pred_check_branch
    %57 = sbr.rel (0) target = $region69
  $region68: #{csgnet_forward.1} parent=0 // pred_region
    _
  $region69: #{csgnet_forward.1} parent=0 // pred_fallthru
    _
  %v58 = vld [vmem:[%s2] sm:$0xff]
  %v59 = vld [vmem:[%s2 + $0x8] sm:$0xff]
  %v60 = vld [vmem:[%s3] sm:$0xff]
  %v61 = vld [vmem:[%s3 + $0x8] sm:$0xff]
  %v62 = vld [vmem:[%s4] sm:$0xff]
  %v63 = vld [vmem:[%s4 + $0x8] sm:$0xff]
  %v64 = vld [vmem:[%s5] sm:$0xff]
  %v65 = vld [vmem:[%s5 + $0x8] sm:$0xff]
  %v66 = vld [vmem:[%s6] sm:$0xff]
  %v67 = vld [vmem:[%s6 + $0x8] sm:$0xff]
  %v68 = vld [vmem:[%s7] sm:$0xff]
  %v69 = vld [vmem:[%s7 + $0x8] sm:$0xf]
  %v70 = vld [vmem:[%s8] sm:$0xff]
  %v71 = vld [vmem:[%s8 + $0x8] sm:$0xf]
  %v72 = vld [vmem:[%s9] sm:$0xf]
  %v73 = vld [vmem:[%s10] sm:$0xf]
  %v74 = vld [vmem:[%s12] sm:$0x3]
  %v75 = vld [vmem:[%s13] sm:$0xff]
  %v76 = vld [vmem:[%s13 + $0x8] sm:$0xff]
  %v77 = vld [vmem:[%s13 + $0x10] sm:$0xff]
  %v78 = vld [vmem:[%s13 + $0x18] sm:$0xff]
  %v79 = vld [vmem:[%s13 + $0x20] sm:$0xff]
  %v80 = vld [vmem:[%s13 + $0x28] sm:$0xff]
  %v81 = vld [vmem:[%s13 + $0x30] sm:$0xff]
  %v82 = vld [vmem:[%s13 + $0x38] sm:$0xff]
  %v83 = vld [vmem:[%s13 + $0x40] sm:$0xff]
  %v84 = vld [vmem:[%s13 + $0x48] sm:$0xff]
  %v85 = vld [vmem:[%s13 + $0x50] sm:$0xff]
  %v86 = vld [vmem:[%s13 + $0x58] sm:$0xff]
  %v87 = vld [vmem:[%s13 + $0x60] sm:$0xff]
  %v88 = vld [vmem:[%s13 + $0x68] sm:$0xff]
  %v89 = vld [vmem:[%s13 + $0x70] sm:$0xff]
  %v90 = vld [vmem:[%s13 + $0x78] sm:$0xff]
  %v91 = vld [vmem:[%s13 + $0x80] sm:$0xff]
  %v92 = vld [vmem:[%s13 + $0x88] sm:$0xff]
  %v93 = vld [vmem:[%s13 + $0x90] sm:$0xff]
  %v94 = vld [vmem:[%s13 + $0x98] sm:$0xff]
  %v95 = vld [vmem:[%s13 + $0xa0] sm:$0xff]
  %v96 = vld [vmem:[%s13 + $0xa8] sm:$0xff]
  %v97 = vld [vmem:[%s13 + $0xb0] sm:$0xff]
  %v98 = vld [vmem:[%s13 + $0xb8] sm:$0xff]
  %v99 = vld [vmem:[%s13 + $0xc0] sm:$0xff]
  %v100 = vld [vmem:[%s13 + $0xc8] sm:$0xff]
  %v101 = vld [vmem:[%s13 + $0xd0] sm:$0xff]
  %v102 = vld [vmem:[%s13 + $0xd8] sm:$0xff]
  %v103 = vld [vmem:[%s13 + $0xe0] sm:$0xff]
  %v104 = vld [vmem:[%s13 + $0xe8] sm:$0xff]
  %v105 = vld [vmem:[%s13 + $0xf0] sm:$0xff]
  %v106 = vld [vmem:[%s13 + $0xf8] sm:$0xff]
  %v107 = vld [vmem:[%s14] sm:$0x1]
  %v108 = vld [vmem:[%s15] sm:$0xff]
  %v109 = vld [vmem:[%s15 + $0x8] sm:$0xff]
  %v110 = vld [vmem:[%s15 + $0x10] sm:$0xff]
  %v111 = vld [vmem:[%s15 + $0x18] sm:$0xff]
  %v112 = vld [vmem:[%s15 + $0x20] sm:$0xff]
  %v113 = vld [vmem:[%s15 + $0x28] sm:$0xff]
  %v114 = vld [vmem:[%s15 + $0x30] sm:$0xff]
  %v115 = vld [vmem:[%s15 + $0x38] sm:$0xff]
  %v116 = vld [vmem:[#allocation2] sm:$0x1]
  %v117 = vld [vmem:[%s1] sm:$0x1]
  %v118 = vld [vmem:[%s0] sm:$0xff]
  %v119 = vld [vmem:[%s0 + $0x8] sm:$0xff]
  %vm120 = vcmask 7168
  %v122 = vsel %vm120, %v58, 0
  %v125 = vsel %vm120, %v59, 0
  %vm127 = vcmask 1040384
  %v129 = vsel %vm127, %v117, 0
  %131 = vmatprep.subr.mxu0 0.0
  %132 = vmatpush1.msra.mxu0 %v129
  %133 = vmatprep.subr.mxu0 0.0
  %134 = vmatpush1.msra.mxu0 0.0
  %135 = vmatprep.subr.mxu0 0.0
  %136 = vmatpush1.msra.mxu0 0.0
  %137 = vmatprep.subr.mxu0 0.0
  %138 = vmatpush1.msra.mxu0 0.0
  %139 = vmatprep.subr.mxu0 0.0
  %140 = vmatpush1.msra.mxu0 0.0
  %141 = vmatprep.subr.mxu0 0.0
  %142 = vmatpush1.msra.mxu0 0.0
  %143 = vmatprep.subr.mxu0 0.0
  %144 = vmatpush1.msra.mxu0 0.0
  %145 = vmatprep.subr.mxu0 0.0
  %146 = vmatpush1.msra.mxu0 0.0
  %147 = vmatprep.subr.mxu0 0.0
  %148 = vmatpush1.msra.mxu0 0.0
  %149 = vmatprep.subr.mxu0 0.0
  %150 = vmatpush1.msra.mxu0 0.0
  %151 = vmatprep.subr.mxu0 0.0
  %152 = vmatpush1.msra.mxu0 0.0
  %153 = vmatprep.subr.mxu0 0.0
  %154 = vmatpush1.msra.mxu0 0.0
  %155 = vmatprep.subr.mxu0 0.0
  %156 = vmatpush1.msra.mxu0 0.0
  %157 = vmatprep.subr.mxu0 0.0
  %158 = vmatpush1.msra.mxu0 0.0
  %159 = vmatprep.subr.mxu0 0.0
  %160 = vmatpush1.msra.mxu0 0.0
  %161 = vmatprep.subr.mxu0 0.0
  %162 = vmatpush1.msra.mxu0 0.0
  %163 = vmatprep.subr.mxu0 0.0
  %164 = vmatpush1.msra.mxu0 0.0
  %165 = vmatprep.subr.mxu0 0.0
  %166 = vmatpush1.msra.mxu0 0.0
  %167 = vmatprep.subr.mxu0 0.0
  %168 = vmatpush1.msra.mxu0 0.0
  %169 = vmatprep.subr.mxu0 0.0
  %170 = vmatpush1.msra.mxu0 0.0
  %171 = vmatprep.subr.mxu0 0.0
  %172 = vmatpush1.msra.mxu0 0.0
  %173 = vmatprep.subr.mxu0 0.0
  %174 = vmatpush1.msra.mxu0 0.0
  %175 = vmatprep.subr.mxu0 0.0
  %176 = vmatpush1.msra.mxu0 0.0
  %177 = vmatprep.subr.mxu0 0.0
  %178 = vmatpush1.msra.mxu0 0.0
  %179 = vmatprep.subr.mxu0 0.0
  %180 = vmatpush1.msra.mxu0 0.0
  %181 = vmatprep.subr.mxu0 0.0
  %182 = vmatpush1.msra.mxu0 0.0
  %183 = vmatprep.subr.mxu0 0.0
  %184 = vmatpush1.msra.mxu0 0.0
  %185 = vmatprep.subr.mxu0 0.0
  %186 = vmatpush1.msra.mxu0 0.0
  %187 = vmatprep.subr.mxu0 0.0
  %188 = vmatpush1.msra.mxu0 0.0
  %189 = vmatprep.subr.mxu0 0.0
  %190 = vmatpush1.msra.mxu0 0.0
  %191 = vmatprep.subr.mxu0 0.0
  %192 = vmatpush1.msra.mxu0 0.0
  %193 = vmatprep.subr.mxu0 0.0
  %194 = vmatpush1.msra.mxu0 0.0
  %195 = vmatprep.mubr.f32.mxu0 0.0
  %196 = vmatmul.mubr.f32.gmra.mrb[0].mxu0 %v122
  %v197 = vpop.f32.mrb[0].mxu0
  %v198 = vadd.f32 0.0, %v197
  %v199 = vpop.f32.mrb[0].mxu0
  %200 = vmatprep.mubr.f32.mxu0 0.0
  %201 = vmatmul.mubr.f32.gmra.mrb[0].mxu0 %v125
  %v202 = vpop.f32.mrb[0].mxu0
  %v203 = vadd.f32 0.0, %v202
  %v204 = vpop.f32.mrb[0].mxu0
  %205 = vdwg.mxu0
  %v207 = vsel %vm120, %v60, 0
  %v210 = vsel %vm120, %v61, 0
  %212 = vmatprep.subr.mxu0 0.0
  %213 = vmatpush1.msra.mxu0 %v129
  %214 = vmatprep.subr.mxu0 0.0
  %215 = vmatpush1.msra.mxu0 0.0
  %216 = vmatprep.subr.mxu0 0.0
  %217 = vmatpush1.msra.mxu0 0.0
  %218 = vmatprep.subr.mxu0 0.0
  %219 = vmatpush1.msra.mxu0 0.0
  %220 = vmatprep.subr.mxu0 0.0
  %221 = vmatpush1.msra.mxu0 0.0
  %222 = vmatprep.subr.mxu0 0.0
  %223 = vmatpush1.msra.mxu0 0.0
  %224 = vmatprep.subr.mxu0 0.0
  %225 = vmatpush1.msra.mxu0 0.0
  %226 = vmatprep.subr.mxu0 0.0
  %227 = vmatpush1.msra.mxu0 0.0
  %228 = vmatprep.subr.mxu0 0.0
  %229 = vmatpush1.msra.mxu0 0.0
  %230 = vmatprep.subr.mxu0 0.0
  %231 = vmatpush1.msra.mxu0 0.0
  %232 = vmatprep.subr.mxu0 0.0
  %233 = vmatpush1.msra.mxu0 0.0
  %234 = vmatprep.subr.mxu0 0.0
  %235 = vmatpush1.msra.mxu0 0.0
  %236 = vmatprep.subr.mxu0 0.0
  %237 = vmatpush1.msra.mxu0 0.0
  %238 = vmatprep.subr.mxu0 0.0
  %239 = vmatpush1.msra.mxu0 0.0
  %240 = vmatprep.subr.mxu0 0.0
  %241 = vmatpush1.msra.mxu0 0.0
  %242 = vmatprep.subr.mxu0 0.0
  %243 = vmatpush1.msra.mxu0 0.0
  %244 = vmatprep.subr.mxu0 0.0
  %245 = vmatpush1.msra.mxu0 0.0
  %246 = vmatprep.subr.mxu0 0.0
  %247 = vmatpush1.msra.mxu0 0.0
  %248 = vmatprep.subr.mxu0 0.0
  %249 = vmatpush1.msra.mxu0 0.0
  %250 = vmatprep.subr.mxu0 0.0
  %251 = vmatpush1.msra.mxu0 0.0
  %252 = vmatprep.subr.mxu0 0.0
  %253 = vmatpush1.msra.mxu0 0.0
  %254 = vmatprep.subr.mxu0 0.0
  %255 = vmatpush1.msra.mxu0 0.0
  %256 = vmatprep.subr.mxu0 0.0
  %257 = vmatpush1.msra.mxu0 0.0
  %258 = vmatprep.subr.mxu0 0.0
  %259 = vmatpush1.msra.mxu0 0.0
  %260 = vmatprep.subr.mxu0 0.0
  %261 = vmatpush1.msra.mxu0 0.0
  %262 = vmatprep.subr.mxu0 0.0
  %263 = vmatpush1.msra.mxu0 0.0
  %264 = vmatprep.subr.mxu0 0.0
  %265 = vmatpush1.msra.mxu0 0.0
  %266 = vmatprep.subr.mxu0 0.0
  %267 = vmatpush1.msra.mxu0 0.0
  %268 = vmatprep.subr.mxu0 0.0
  %269 = vmatpush1.msra.mxu0 0.0
  %270 = vmatprep.subr.mxu0 0.0
  %271 = vmatpush1.msra.mxu0 0.0
  %272 = vmatprep.subr.mxu0 0.0
  %273 = vmatpush1.msra.mxu0 0.0
  %274 = vmatprep.subr.mxu0 0.0
  %275 = vmatpush1.msra.mxu0 0.0
  %276 = vmatprep.mubr.f32.mxu0 0.0
  %277 = vmatmul.mubr.f32.gmra.mrb[0].mxu0 %v207
  %v278 = vpop.f32.mrb[0].mxu0
  %v279 = vadd.f32 0.0, %v278
  %v280 = vpop.f32.mrb[0].mxu0
  %281 = vmatprep.mubr.f32.mxu0 0.0
  %282 = vmatmul.mubr.f32.gmra.mrb[0].mxu0 %v210
  %v283 = vpop.f32.mrb[0].mxu0
  %v284 = vadd.f32 0.0, %v283
  %v285 = vpop.f32.mrb[0].mxu0
  %286 = vdwg.mxu0
  %vm287 = vcmask 130048
  %v289 = vsel %vm287, %v198, 0
  %v292 = vsel %vm287, %v203, 0
  %294 = vmatprep.subr.mxu0 0.0
  %295 = vmatpush1.msra.mxu0 %v118
  %296 = vmatprep.subr.mxu0 0.0
  %297 = vmatpush1.msra.mxu0 %v119
  %298 = vmatprep.subr.mxu0 0.0
  %299 = vmatpush1.msra.mxu0 0.0
  %300 = vmatprep.subr.mxu0 0.0
  %301 = vmatpush1.msra.mxu0 0.0
  %302 = vmatprep.subr.mxu0 0.0
  %303 = vmatpush1.msra.mxu0 0.0
  %304 = vmatprep.subr.mxu0 0.0
  %305 = vmatpush1.msra.mxu0 0.0
  %306 = vmatprep.subr.mxu0 0.0
  %307 = vmatpush1.msra.mxu0 0.0
  %308 = vmatprep.subr.mxu0 0.0
  %309 = vmatpush1.msra.mxu0 0.0
  %310 = vmatprep.subr.mxu0 0.0
  %311 = vmatpush1.msra.mxu0 0.0
  %312 = vmatprep.subr.mxu0 0.0
  %313 = vmatpush1.msra.mxu0 0.0
  %314 = vmatprep.subr.mxu0 0.0
  %315 = vmatpush1.msra.mxu0 0.0
  %316 = vmatprep.subr.mxu0 0.0
  %317 = vmatpush1.msra.mxu0 0.0
  %318 = vmatprep.subr.mxu0 0.0
  %319 = vmatpush1.msra.mxu0 0.0
  %320 = vmatprep.subr.mxu0 0.0
  %321 = vmatpush1.msra.mxu0 0.0
  %322 = vmatprep.subr.mxu0 0.0
  %323 = vmatpush1.msra.mxu0 0.0
  %324 = vmatprep.subr.mxu0 0.0
  %325 = vmatpush1.msra.mxu0 0.0
  %326 = vmatprep.subr.mxu0 0.0
  %327 = vmatpush1.msra.mxu0 0.0
  %328 = vmatprep.subr.mxu0 0.0
  %329 = vmatpush1.msra.mxu0 0.0
  %330 = vmatprep.subr.mxu0 0.0
  %331 = vmatpush1.msra.mxu0 0.0
  %332 = vmatprep.subr.mxu0 0.0
  %333 = vmatpush1.msra.mxu0 0.0
  %334 = vmatprep.subr.mxu0 0.0
  %335 = vmatpush1.msra.mxu0 0.0
  %336 = vmatprep.subr.mxu0 0.0
  %337 = vmatpush1.msra.mxu0 0.0
  %338 = vmatprep.subr.mxu0 0.0
  %339 = vmatpush1.msra.mxu0 0.0
  %340 = vmatprep.subr.mxu0 0.0
  %341 = vmatpush1.msra.mxu0 0.0
  %342 = vmatprep.subr.mxu0 0.0
  %343 = vmatpush1.msra.mxu0 0.0
  %344 = vmatprep.subr.mxu0 0.0
  %345 = vmatpush1.msra.mxu0 0.0
  %346 = vmatprep.subr.mxu0 0.0
  %347 = vmatpush1.msra.mxu0 0.0
  %348 = vmatprep.subr.mxu0 0.0
  %349 = vmatpush1.msra.mxu0 0.0
  %350 = vmatprep.subr.mxu0 0.0
  %351 = vmatpush1.msra.mxu0 0.0
  %352 = vmatprep.subr.mxu0 0.0
  %353 = vmatpush1.msra.mxu0 0.0
  %354 = vmatprep.subr.mxu0 0.0
  %355 = vmatpush1.msra.mxu0 0.0
  %356 = vmatprep.subr.mxu0 0.0
  %357 = vmatpush1.msra.mxu0 0.0
  %358 = vmatprep.mubr.f32.mxu0 0.0
  %359 = vmatmul.mubr.f32.gmra.mrb[0].mxu0 %v289
  %v360 = vpop.f32.mrb[0].mxu0
  %v361 = vadd.f32 %v279, %v360
  %v362 = vpop.f32.mrb[0].mxu0
  %363 = vmatprep.mubr.f32.mxu0 0.0
  %364 = vmatmul.mubr.f32.gmra.mrb[0].mxu0 %v292
  %v365 = vpop.f32.mrb[0].mxu0
  %v366 = vadd.f32 %v284, %v365
  %v367 = vpop.f32.mrb[0].mxu0
  %368 = vdwg.mxu0
  %370 = vset.pattern.permute.xlu0 0
  %371 = vperm.xlu0 %370, %v62
  %v372 = vpop.permute.xlu0 %371
  %375 = vset.pattern.permute.xlu0 0
  %376 = vperm.xlu0 %375, %v63
  %v377 = vpop.permute.xlu0 %376
  %v379 = vadd.f32 %v361, %v372
  %v380 = vadd.f32 %v366, %v377
  %v381 = vmax.f32 %v379, 0.0
  %v382 = vmax.f32 %v380, 0.0
  %v383 = vsel %vm287, %v381, 0.0
  %v384 = vsel %vm287, %v382, 0.0
  %v385 = vadd.f32 %v383, %v384
  %386 = vadd.xlane.f32.xlu0 %v385
  %v387 = vpop.xlane.xlu0 %386
  %v388 = vrot.slane %v387, 4
  %v389 = vadd.f32 %v387, %v388
  %v390 = vrot.slane %v389, 2
  %v391 = vadd.f32 %v389, %v390
  %v392 = vrot.slane %v391, 1
  %v393 = vadd.f32 %v391, %v392
  %s394 = vtos %v393
  %v395 = vstv %s394
  %v396 = vrcp.pop 256.0
  %v397 = vmul.f32 %v395, %v396
  %v398 = vsub.f32 %v381, %v397
  %v399 = vsub.f32 %v382, %v397
  %v400 = vmul.f32 %v398, %v398
  %v401 = vmul.f32 %v399, %v399
  %v402 = vsel %vm287, %v400, 0.0
  %v403 = vsel %vm287, %v401, 0.0
  %v404 = vadd.f32 %v402, %v403
  %405 = vadd.xlane.f32.xlu0 %v404
  %v406 = vpop.xlane.xlu0 %405
  %v407 = vrot.slane %v406, 4
  %v408 = vadd.f32 %v406, %v407
  %v409 = vrot.slane %v408, 2
  %v410 = vadd.f32 %v408, %v409
  %v411 = vrot.slane %v410, 1
  %v412 = vadd.f32 %v410, %v411
  %s413 = vtos %v412
  %v414 = vstv %s413
  %v415 = vmul.f32 %v414, %v396
  %v416 = vadd.f32 %v415, 1e-05
  %v417 = vrsqrt.pop %v416
  %v418 = vmul.f32 %v398, %v417
  %v419 = vmul.f32 %v399, %v417
  %v420 = vmul.f32 %v418, %v64
  %v421 = vmul.f32 %v419, %v65
  %v422 = vadd.f32 %v420, %v66
  %v423 = vadd.f32 %v421, %v67
  %425 = vset.pattern.permute.xlu0 0
  %426 = vperm.xlu0 %425, %v70
  %v427 = vpop.permute.xlu0 %426
  %430 = vset.pattern.permute.xlu0 0
  %431 = vperm.xlu0 %430, %v71
  %v432 = vpop.permute.xlu0 %431
  %v435 = vsel %vm287, %v68, 0
  %v438 = vsel %vm287, %v69, 0
  %440 = vmatprep.subr.mxu0 0.0
  %441 = vmatpush1.msra.mxu0 %v422
  %442 = vmatprep.subr.mxu0 0.0
  %443 = vmatpush1.msra.mxu0 %v423
  %444 = vmatprep.subr.mxu0 0.0
  %445 = vmatpush1.msra.mxu0 0.0
  %446 = vmatprep.subr.mxu0 0.0
  %447 = vmatpush1.msra.mxu0 0.0
  %448 = vmatprep.subr.mxu0 0.0
  %449 = vmatpush1.msra.mxu0 0.0
  %450 = vmatprep.subr.mxu0 0.0
  %451 = vmatpush1.msra.mxu0 0.0
  %452 = vmatprep.subr.mxu0 0.0
  %453 = vmatpush1.msra.mxu0 0.0
  %454 = vmatprep.subr.mxu0 0.0
  %455 = vmatpush1.msra.mxu0 0.0
  %456 = vmatprep.subr.mxu0 0.0
  %457 = vmatpush1.msra.mxu0 0.0
  %458 = vmatprep.subr.mxu0 0.0
  %459 = vmatpush1.msra.mxu0 0.0
  %460 = vmatprep.subr.mxu0 0.0
  %461 = vmatpush1.msra.mxu0 0.0
  %462 = vmatprep.subr.mxu0 0.0
  %463 = vmatpush1.msra.mxu0 0.0
  %464 = vmatprep.subr.mxu0 0.0
  %465 = vmatpush1.msra.mxu0 0.0
  %466 = vmatprep.subr.mxu0 0.0
  %467 = vmatpush1.msra.mxu0 0.0
  %468 = vmatprep.subr.mxu0 0.0
  %469 = vmatpush1.msra.mxu0 0.0
  %470 = vmatprep.subr.mxu0 0.0
  %471 = vmatpush1.msra.mxu0 0.0
  %472 = vmatprep.subr.mxu0 0.0
  %473 = vmatpush1.msra.mxu0 0.0
  %474 = vmatprep.subr.mxu0 0.0
  %475 = vmatpush1.msra.mxu0 0.0
  %476 = vmatprep.subr.mxu0 0.0
  %477 = vmatpush1.msra.mxu0 0.0
  %478 = vmatprep.subr.mxu0 0.0
  %479 = vmatpush1.msra.mxu0 0.0
  %480 = vmatprep.subr.mxu0 0.0
  %481 = vmatpush1.msra.mxu0 0.0
  %482 = vmatprep.subr.mxu0 0.0
  %483 = vmatpush1.msra.mxu0 0.0
  %484 = vmatprep.subr.mxu0 0.0
  %485 = vmatpush1.msra.mxu0 0.0
  %486 = vmatprep.subr.mxu0 0.0
  %487 = vmatpush1.msra.mxu0 0.0
  %488 = vmatprep.subr.mxu0 0.0
  %489 = vmatpush1.msra.mxu0 0.0
  %490 = vmatprep.subr.mxu0 0.0
  %491 = vmatpush1.msra.mxu0 0.0
  %492 = vmatprep.subr.mxu0 0.0
  %493 = vmatpush1.msra.mxu0 0.0
  %494 = vmatprep.subr.mxu0 0.0
  %495 = vmatpush1.msra.mxu0 0.0
  %496 = vmatprep.subr.mxu0 0.0
  %497 = vmatpush1.msra.mxu0 0.0
  %498 = vmatprep.subr.mxu0 0.0
  %499 = vmatpush1.msra.mxu0 0.0
  %500 = vmatprep.subr.mxu0 0.0
  %501 = vmatpush1.msra.mxu0 0.0
  %502 = vmatprep.subr.mxu0 0.0
  %503 = vmatpush1.msra.mxu0 0.0
  %504 = vmatprep.mubr.f32.mxu0 0.0
  %505 = vmatmul.mubr.f32.gmra.mrb[0].mxu0 %v435
  %v506 = vpop.f32.mrb[0].mxu0
  %v507 = vadd.f32 %v427, %v506
  %v508 = vpop.f32.mrb[0].mxu0
  %509 = vmatprep.mubr.f32.mxu0 0.0
  %510 = vmatmul.mubr.f32.gmra.mrb[0].mxu0 %v438
  %v511 = vpop.f32.mrb[0].mxu0
  %v512 = vadd.f32 %v432, %v511
  %v513 = vpop.f32.mrb[0].mxu0
  %514 = vdwg.mxu0
  %v515 = vmax.f32 %v507, 0.0
  %v516 = vmax.f32 %v512, 0.0
  %518 = vset.pattern.permute.xlu0 0
  %519 = vperm.xlu0 %518, %v73
  %v520 = vpop.permute.xlu0 %519
  %vm522 = vcmask 97280
  %v524 = vsel %vm522, %v72, 0
  %vm526 = vcmask 1043456
  %v528 = vsel %vm526, %v516, 0
  %530 = vmatprep.subr.mxu0 0.0
  %531 = vmatpush1.msra.mxu0 %v515
  %532 = vmatprep.subr.mxu0 0.0
  %533 = vmatpush1.msra.mxu0 %v528
  %534 = vmatprep.subr.mxu0 0.0
  %535 = vmatpush1.msra.mxu0 0.0
  %536 = vmatprep.subr.mxu0 0.0
  %537 = vmatpush1.msra.mxu0 0.0
  %538 = vmatprep.subr.mxu0 0.0
  %539 = vmatpush1.msra.mxu0 0.0
  %540 = vmatprep.subr.mxu0 0.0
  %541 = vmatpush1.msra.mxu0 0.0
  %542 = vmatprep.subr.mxu0 0.0
  %543 = vmatpush1.msra.mxu0 0.0
  %544 = vmatprep.subr.mxu0 0.0
  %545 = vmatpush1.msra.mxu0 0.0
  %546 = vmatprep.subr.mxu0 0.0
  %547 = vmatpush1.msra.mxu0 0.0
  %548 = vmatprep.subr.mxu0 0.0
  %549 = vmatpush1.msra.mxu0 0.0
  %550 = vmatprep.subr.mxu0 0.0
  %551 = vmatpush1.msra.mxu0 0.0
  %552 = vmatprep.subr.mxu0 0.0
  %553 = vmatpush1.msra.mxu0 0.0
  %554 = vmatprep.subr.mxu0 0.0
  %555 = vmatpush1.msra.mxu0 0.0
  %556 = vmatprep.subr.mxu0 0.0
  %557 = vmatpush1.msra.mxu0 0.0
  %558 = vmatprep.subr.mxu0 0.0
  %559 = vmatpush1.msra.mxu0 0.0
  %560 = vmatprep.subr.mxu0 0.0
  %561 = vmatpush1.msra.mxu0 0.0
  %562 = vmatprep.subr.mxu0 0.0
  %563 = vmatpush1.msra.mxu0 0.0
  %564 = vmatprep.subr.mxu0 0.0
  %565 = vmatpush1.msra.mxu0 0.0
  %566 = vmatprep.subr.mxu0 0.0
  %567 = vmatpush1.msra.mxu0 0.0
  %568 = vmatprep.subr.mxu0 0.0
  %569 = vmatpush1.msra.mxu0 0.0
  %570 = vmatprep.subr.mxu0 0.0
  %571 = vmatpush1.msra.mxu0 0.0
  %572 = vmatprep.subr.mxu0 0.0
  %573 = vmatpush1.msra.mxu0 0.0
  %574 = vmatprep.subr.mxu0 0.0
  %575 = vmatpush1.msra.mxu0 0.0
  %576 = vmatprep.subr.mxu0 0.0
  %577 = vmatpush1.msra.mxu0 0.0
  %578 = vmatprep.subr.mxu0 0.0
  %579 = vmatpush1.msra.mxu0 0.0
  %580 = vmatprep.subr.mxu0 0.0
  %581 = vmatpush1.msra.mxu0 0.0
  %582 = vmatprep.subr.mxu0 0.0
  %583 = vmatpush1.msra.mxu0 0.0
  %584 = vmatprep.subr.mxu0 0.0
  %585 = vmatpush1.msra.mxu0 0.0
  %586 = vmatprep.subr.mxu0 0.0
  %587 = vmatpush1.msra.mxu0 0.0
  %588 = vmatprep.subr.mxu0 0.0
  %589 = vmatpush1.msra.mxu0 0.0
  %590 = vmatprep.subr.mxu0 0.0
  %591 = vmatpush1.msra.mxu0 0.0
  %592 = vmatprep.subr.mxu0 0.0
  %593 = vmatpush1.msra.mxu0 0.0
  %594 = vmatprep.mubr.f32.mxu0 0.0
  %595 = vmatmul.mubr.f32.gmra.mrb[0].mxu0 %v524
  %v596 = vpop.f32.mrb[0].mxu0
  %v597 = vadd.f32 %v520, %v596
  %v598 = vpop.f32.mrb[0].mxu0
  %599 = vdwg.mxu0
  %v600 = vmax.f32 %v597, 0.0
  %v601 = vld [vmem:[%s11] sm:$0xff]
  %v602 = vld [vmem:[%s11 + $0x8] sm:$0xff]
  %v603 = vld [vmem:[%s11 + $0x10] sm:$0xff]
  %v604 = vld [vmem:[%s11 + $0x18] sm:$0xff]
  %v606 = vsel %vm287, %v600, 0
  %608 = vmatprep.subr.mxu0 %v602
  %609 = vmatpush1.msra.mxu0 %v601
  %610 = vmatprep.subr.mxu0 %v604
  %611 = vmatpush1.msra.mxu0 %v603
  %612 = vmatprep.subr.mxu0 0.0
  %613 = vmatpush1.msra.mxu0 0.0
  %614 = vmatprep.subr.mxu0 0.0
  %615 = vmatpush1.msra.mxu0 0.0
  %616 = vmatprep.subr.mxu0 0.0
  %617 = vmatpush1.msra.mxu0 0.0
  %618 = vmatprep.subr.mxu0 0.0
  %619 = vmatpush1.msra.mxu0 0.0
  %620 = vmatprep.subr.mxu0 0.0
  %621 = vmatpush1.msra.mxu0 0.0
  %622 = vmatprep.subr.mxu0 0.0
  %623 = vmatpush1.msra.mxu0 0.0
  %624 = vmatprep.subr.mxu0 0.0
  %625 = vmatpush1.msra.mxu0 0.0
  %626 = vmatprep.subr.mxu0 0.0
  %627 = vmatpush1.msra.mxu0 0.0
  %628 = vmatprep.subr.mxu0 0.0
  %629 = vmatpush1.msra.mxu0 0.0
  %630 = vmatprep.subr.mxu0 0.0
  %631 = vmatpush1.msra.mxu0 0.0
  %632 = vmatprep.subr.mxu0 0.0
  %633 = vmatpush1.msra.mxu0 0.0
  %634 = vmatprep.subr.mxu0 0.0
  %635 = vmatpush1.msra.mxu0 0.0
  %636 = vmatprep.subr.mxu0 0.0
  %637 = vmatpush1.msra.mxu0 0.0
  %638 = vmatprep.subr.mxu0 0.0
  %639 = vmatpush1.msra.mxu0 0.0
  %640 = vmatprep.subr.mxu0 0.0
  %641 = vmatpush1.msra.mxu0 0.0
  %642 = vmatprep.subr.mxu0 0.0
  %643 = vmatpush1.msra.mxu0 0.0
  %644 = vmatprep.subr.mxu0 0.0
  %645 = vmatpush1.msra.mxu0 0.0
  %646 = vmatprep.subr.mxu0 0.0
  %647 = vmatpush1.msra.mxu0 0.0
  %648 = vmatprep.subr.mxu0 0.0
  %649 = vmatpush1.msra.mxu0 0.0
  %650 = vmatprep.subr.mxu0 0.0
  %651 = vmatpush1.msra.mxu0 0.0
  %652 = vmatprep.subr.mxu0 0.0
  %653 = vmatpush1.msra.mxu0 0.0
  %654 = vmatprep.subr.mxu0 0.0
  %655 = vmatpush1.msra.mxu0 0.0
  %656 = vmatprep.subr.mxu0 0.0
  %657 = vmatpush1.msra.mxu0 0.0
  %658 = vmatprep.subr.mxu0 0.0
  %659 = vmatpush1.msra.mxu0 0.0
  %660 = vmatprep.subr.mxu0 0.0
  %661 = vmatpush1.msra.mxu0 0.0
  %662 = vmatprep.subr.mxu0 0.0
  %663 = vmatpush1.msra.mxu0 0.0
  %664 = vmatprep.subr.mxu0 0.0
  %665 = vmatpush1.msra.mxu0 0.0
  %666 = vmatprep.subr.mxu0 0.0
  %667 = vmatpush1.msra.mxu0 0.0
  %668 = vmatprep.subr.mxu0 0.0
  %669 = vmatpush1.msra.mxu0 0.0
  %670 = vmatprep.subr.mxu0 0.0
  %671 = vmatpush1.msra.mxu0 0.0
  %672 = vmatprep.mubr.f32.mxu0 0.0
  %673 = vmatmul.mubr.f32.gmra.mrb[0].mxu0 %v606
  %v674 = vpop.f32.mrb[0].mxu0
  %v675 = vadd.f32 0.0, %v674
  %v676 = vpop.f32.mrb[0].mxu0
  %v677 = vadd.f32 0.0, %v676
  %678 = vdwg.mxu0
  %v681 = vcombine.low %v675, %v677
  %v683 = vunpack.c.l.s4 1966171168
  %v684 = vunpack.c.0.s8 %v683
  %v685 = vlaneseq
  %v686 = vshrl.u32 %v685, 7
  %v687 = vsub.s32 %v684, %v686
  %v688 = vrot.slane %v681, %v687
  %v690 = vunpack.c.l.s4 1966171168
  %v691 = vunpack.c.0.s8 %v690
  %v692 = vlaneseq
  %v693 = vshrl.u32 %v692, 7
  %v694 = vsub.s32 %v691, %v693
  %v695 = vrot.slane %v688, %v694
  %v697 = vadd.f32 %v74, %v695
  %s698 = scalar_lea.vmem %s11, 32
  %v699 = vld [vmem:[%s698] sm:$0xff]
  %v700 = vld [vmem:[%s698 + $0x8] sm:$0xff]
  %v701 = vld [vmem:[%s698 + $0x10] sm:$0xff]
  %v702 = vld [vmem:[%s698 + $0x18] sm:$0xff]
  %v703 = vrot.slane %v600, 1
  %v704 = vsel %vm287, %v703, 0
  %706 = vmatprep.subr.mxu0 %v700
  %707 = vmatpush1.msra.mxu0 %v699
  %708 = vmatprep.subr.mxu0 %v702
  %709 = vmatpush1.msra.mxu0 %v701
  %710 = vmatprep.subr.mxu0 0.0
  %711 = vmatpush1.msra.mxu0 0.0
  %712 = vmatprep.subr.mxu0 0.0
  %713 = vmatpush1.msra.mxu0 0.0
  %714 = vmatprep.subr.mxu0 0.0
  %715 = vmatpush1.msra.mxu0 0.0
  %716 = vmatprep.subr.mxu0 0.0
  %717 = vmatpush1.msra.mxu0 0.0
  %718 = vmatprep.subr.mxu0 0.0
  %719 = vmatpush1.msra.mxu0 0.0
  %720 = vmatprep.subr.mxu0 0.0
  %721 = vmatpush1.msra.mxu0 0.0
  %722 = vmatprep.subr.mxu0 0.0
  %723 = vmatpush1.msra.mxu0 0.0
  %724 = vmatprep.subr.mxu0 0.0
  %725 = vmatpush1.msra.mxu0 0.0
  %726 = vmatprep.subr.mxu0 0.0
  %727 = vmatpush1.msra.mxu0 0.0
  %728 = vmatprep.subr.mxu0 0.0
  %729 = vmatpush1.msra.mxu0 0.0
  %730 = vmatprep.subr.mxu0 0.0
  %731 = vmatpush1.msra.mxu0 0.0
  %732 = vmatprep.subr.mxu0 0.0
  %733 = vmatpush1.msra.mxu0 0.0
  %734 = vmatprep.subr.mxu0 0.0
  %735 = vmatpush1.msra.mxu0 0.0
  %736 = vmatprep.subr.mxu0 0.0
  %737 = vmatpush1.msra.mxu0 0.0
  %738 = vmatprep.subr.mxu0 0.0
  %739 = vmatpush1.msra.mxu0 0.0
  %740 = vmatprep.subr.mxu0 0.0
  %741 = vmatpush1.msra.mxu0 0.0
  %742 = vmatprep.subr.mxu0 0.0
  %743 = vmatpush1.msra.mxu0 0.0
  %744 = vmatprep.subr.mxu0 0.0
  %745 = vmatpush1.msra.mxu0 0.0
  %746 = vmatprep.subr.mxu0 0.0
  %747 = vmatpush1.msra.mxu0 0.0
  %748 = vmatprep.subr.mxu0 0.0
  %749 = vmatpush1.msra.mxu0 0.0
  %750 = vmatprep.subr.mxu0 0.0
  %751 = vmatpush1.msra.mxu0 0.0
  %752 = vmatprep.subr.mxu0 0.0
  %753 = vmatpush1.msra.mxu0 0.0
  %754 = vmatprep.subr.mxu0 0.0
  %755 = vmatpush1.msra.mxu0 0.0
  %756 = vmatprep.subr.mxu0 0.0
  %757 = vmatpush1.msra.mxu0 0.0
  %758 = vmatprep.subr.mxu0 0.0
  %759 = vmatpush1.msra.mxu0 0.0
  %760 = vmatprep.subr.mxu0 0.0
  %761 = vmatpush1.msra.mxu0 0.0
  %762 = vmatprep.subr.mxu0 0.0
  %763 = vmatpush1.msra.mxu0 0.0
  %764 = vmatprep.subr.mxu0 0.0
  %765 = vmatpush1.msra.mxu0 0.0
  %766 = vmatprep.subr.mxu0 0.0
  %767 = vmatpush1.msra.mxu0 0.0
  %768 = vmatprep.subr.mxu0 0.0
  %769 = vmatpush1.msra.mxu0 0.0
  %770 = vmatprep.mubr.f32.mxu0 0.0
  %771 = vmatmul.mubr.f32.gmra.mrb[0].mxu0 %v704
  %v772 = vpop.f32.mrb[0].mxu0
  %v773 = vadd.f32 0.0, %v772
  %v774 = vpop.f32.mrb[0].mxu0
  %v775 = vadd.f32 0.0, %v774
  %776 = vdwg.mxu0
  %v779 = vcombine.low %v773, %v775
  %v781 = vunpack.c.l.s4 1966171168
  %v782 = vunpack.c.0.s8 %v781
  %v783 = vlaneseq
  %v784 = vshrl.u32 %v783, 7
  %v785 = vsub.s32 %v782, %v784
  %v786 = vrot.slane %v779, %v785
  %v788 = vunpack.c.l.s4 1966171168
  %v789 = vunpack.c.0.s8 %v788
  %v790 = vlaneseq
  %v791 = vshrl.u32 %v790, 7
  %v792 = vsub.s32 %v789, %v791
  %v793 = vrot.slane %v786, %v792
  %v795 = vadd.f32 %v697, %v793
  %s796 = scalar_lea.vmem %s11, 64
  %v797 = vld [vmem:[%s796] sm:$0xff]
  %v798 = vld [vmem:[%s796 + $0x8] sm:$0xff]
  %v799 = vld [vmem:[%s796 + $0x10] sm:$0xff]
  %v800 = vld [vmem:[%s796 + $0x18] sm:$0xff]
  %v801 = vrot.slane %v600, 2
  %v802 = vsel %vm287, %v801, 0
  %804 = vmatprep.subr.mxu0 %v798
  %805 = vmatpush1.msra.mxu0 %v797
  %806 = vmatprep.subr.mxu0 %v800
  %807 = vmatpush1.msra.mxu0 %v799
  %808 = vmatprep.subr.mxu0 0.0
  %809 = vmatpush1.msra.mxu0 0.0
  %810 = vmatprep.subr.mxu0 0.0
  %811 = vmatpush1.msra.mxu0 0.0
  %812 = vmatprep.subr.mxu0 0.0
  %813 = vmatpush1.msra.mxu0 0.0
  %814 = vmatprep.subr.mxu0 0.0
  %815 = vmatpush1.msra.mxu0 0.0
  %816 = vmatprep.subr.mxu0 0.0
  %817 = vmatpush1.msra.mxu0 0.0
  %818 = vmatprep.subr.mxu0 0.0
  %819 = vmatpush1.msra.mxu0 0.0
  %820 = vmatprep.subr.mxu0 0.0
  %821 = vmatpush1.msra.mxu0 0.0
  %822 = vmatprep.subr.mxu0 0.0
  %823 = vmatpush1.msra.mxu0 0.0
  %824 = vmatprep.subr.mxu0 0.0
  %825 = vmatpush1.msra.mxu0 0.0
  %826 = vmatprep.subr.mxu0 0.0
  %827 = vmatpush1.msra.mxu0 0.0
  %828 = vmatprep.subr.mxu0 0.0
  %829 = vmatpush1.msra.mxu0 0.0
  %830 = vmatprep.subr.mxu0 0.0
  %831 = vmatpush1.msra.mxu0 0.0
  %832 = vmatprep.subr.mxu0 0.0
  %833 = vmatpush1.msra.mxu0 0.0
  %834 = vmatprep.subr.mxu0 0.0
  %835 = vmatpush1.msra.mxu0 0.0
  %836 = vmatprep.subr.mxu0 0.0
  %837 = vmatpush1.msra.mxu0 0.0
  %838 = vmatprep.subr.mxu0 0.0
  %839 = vmatpush1.msra.mxu0 0.0
  %840 = vmatprep.subr.mxu0 0.0
  %841 = vmatpush1.msra.mxu0 0.0
  %842 = vmatprep.subr.mxu0 0.0
  %843 = vmatpush1.msra.mxu0 0.0
  %844 = vmatprep.subr.mxu0 0.0
  %845 = vmatpush1.msra.mxu0 0.0
  %846 = vmatprep.subr.mxu0 0.0
  %847 = vmatpush1.msra.mxu0 0.0
  %848 = vmatprep.subr.mxu0 0.0
  %849 = vmatpush1.msra.mxu0 0.0
  %850 = vmatprep.subr.mxu0 0.0
  %851 = vmatpush1.msra.mxu0 0.0
  %852 = vmatprep.subr.mxu0 0.0
  %853 = vmatpush1.msra.mxu0 0.0
  %854 = vmatprep.subr.mxu0 0.0
  %855 = vmatpush1.msra.mxu0 0.0
  %856 = vmatprep.subr.mxu0 0.0
  %857 = vmatpush1.msra.mxu0 0.0
  %858 = vmatprep.subr.mxu0 0.0
  %859 = vmatpush1.msra.mxu0 0.0
  %860 = vmatprep.subr.mxu0 0.0
  %861 = vmatpush1.msra.mxu0 0.0
  %862 = vmatprep.subr.mxu0 0.0
  %863 = vmatpush1.msra.mxu0 0.0
  %864 = vmatprep.subr.mxu0 0.0
  %865 = vmatpush1.msra.mxu0 0.0
  %866 = vmatprep.subr.mxu0 0.0
  %867 = vmatpush1.msra.mxu0 0.0
  %868 = vmatprep.mubr.f32.mxu0 0.0
  %869 = vmatmul.mubr.f32.gmra.mrb[0].mxu0 %v802
  %v870 = vpop.f32.mrb[0].mxu0
  %v871 = vadd.f32 0.0, %v870
  %v872 = vpop.f32.mrb[0].mxu0
  %v873 = vadd.f32 0.0, %v872
  %874 = vdwg.mxu0
  %v877 = vcombine.low %v871, %v873
  %v879 = vunpack.c.l.s4 1966171168
  %v880 = vunpack.c.0.s8 %v879
  %v881 = vlaneseq
  %v882 = vshrl.u32 %v881, 7
  %v883 = vsub.s32 %v880, %v882
  %v884 = vrot.slane %v877, %v883
  %v886 = vunpack.c.l.s4 1966171168
  %v887 = vunpack.c.0.s8 %v886
  %v888 = vlaneseq
  %v889 = vshrl.u32 %v888, 7
  %v890 = vsub.s32 %v887, %v889
  %v891 = vrot.slane %v884, %v890
  %v893 = vadd.f32 %v795, %v891
  %s894 = scalar_lea.vmem %s11, 96
  %v895 = vld [vmem:[%s894] sm:$0xff]
  %v896 = vld [vmem:[%s894 + $0x8] sm:$0xff]
  %v897 = vld [vmem:[%s894 + $0x10] sm:$0xff]
  %v898 = vld [vmem:[%s894 + $0x18] sm:$0xff]
  %v899 = vrot.slane %v600, 3
  %v900 = vsel %vm287, %v899, 0
  %902 = vmatprep.subr.mxu0 %v896
  %903 = vmatpush1.msra.mxu0 %v895
  %904 = vmatprep.subr.mxu0 %v898
  %905 = vmatpush1.msra.mxu0 %v897
  %906 = vmatprep.subr.mxu0 0.0
  %907 = vmatpush1.msra.mxu0 0.0
  %908 = vmatprep.subr.mxu0 0.0
  %909 = vmatpush1.msra.mxu0 0.0
  %910 = vmatprep.subr.mxu0 0.0
  %911 = vmatpush1.msra.mxu0 0.0
  %912 = vmatprep.subr.mxu0 0.0
  %913 = vmatpush1.msra.mxu0 0.0
  %914 = vmatprep.subr.mxu0 0.0
  %915 = vmatpush1.msra.mxu0 0.0
  %916 = vmatprep.subr.mxu0 0.0
  %917 = vmatpush1.msra.mxu0 0.0
  %918 = vmatprep.subr.mxu0 0.0
  %919 = vmatpush1.msra.mxu0 0.0
  %920 = vmatprep.subr.mxu0 0.0
  %921 = vmatpush1.msra.mxu0 0.0
  %922 = vmatprep.subr.mxu0 0.0
  %923 = vmatpush1.msra.mxu0 0.0
  %924 = vmatprep.subr.mxu0 0.0
  %925 = vmatpush1.msra.mxu0 0.0
  %926 = vmatprep.subr.mxu0 0.0
  %927 = vmatpush1.msra.mxu0 0.0
  %928 = vmatprep.subr.mxu0 0.0
  %929 = vmatpush1.msra.mxu0 0.0
  %930 = vmatprep.subr.mxu0 0.0
  %931 = vmatpush1.msra.mxu0 0.0
  %932 = vmatprep.subr.mxu0 0.0
  %933 = vmatpush1.msra.mxu0 0.0
  %934 = vmatprep.subr.mxu0 0.0
  %935 = vmatpush1.msra.mxu0 0.0
  %936 = vmatprep.subr.mxu0 0.0
  %937 = vmatpush1.msra.mxu0 0.0
  %938 = vmatprep.subr.mxu0 0.0
  %939 = vmatpush1.msra.mxu0 0.0
  %940 = vmatprep.subr.mxu0 0.0
  %941 = vmatpush1.msra.mxu0 0.0
  %942 = vmatprep.subr.mxu0 0.0
  %943 = vmatpush1.msra.mxu0 0.0
  %944 = vmatprep.subr.mxu0 0.0
  %945 = vmatpush1.msra.mxu0 0.0
  %946 = vmatprep.subr.mxu0 0.0
  %947 = vmatpush1.msra.mxu0 0.0
  %948 = vmatprep.subr.mxu0 0.0
  %949 = vmatpush1.msra.mxu0 0.0
  %950 = vmatprep.subr.mxu0 0.0
  %951 = vmatpush1.msra.mxu0 0.0
  %952 = vmatprep.subr.mxu0 0.0
  %953 = vmatpush1.msra.mxu0 0.0
  %954 = vmatprep.subr.mxu0 0.0
  %955 = vmatpush1.msra.mxu0 0.0
  %956 = vmatprep.subr.mxu0 0.0
  %957 = vmatpush1.msra.mxu0 0.0
  %958 = vmatprep.subr.mxu0 0.0
  %959 = vmatpush1.msra.mxu0 0.0
  %960 = vmatprep.subr.mxu0 0.0
  %961 = vmatpush1.msra.mxu0 0.0
  %962 = vmatprep.subr.mxu0 0.0
  %963 = vmatpush1.msra.mxu0 0.0
  %964 = vmatprep.subr.mxu0 0.0
  %965 = vmatpush1.msra.mxu0 0.0
  %966 = vmatprep.mubr.f32.mxu0 0.0
  %967 = vmatmul.mubr.f32.gmra.mrb[0].mxu0 %v900
  %v968 = vpop.f32.mrb[0].mxu0
  %v969 = vadd.f32 0.0, %v968
  %v970 = vpop.f32.mrb[0].mxu0
  %v971 = vadd.f32 0.0, %v970
  %972 = vdwg.mxu0
  %v975 = vcombine.low %v969, %v971
  %v977 = vunpack.c.l.s4 1966171168
  %v978 = vunpack.c.0.s8 %v977
  %v979 = vlaneseq
  %v980 = vshrl.u32 %v979, 7
  %v981 = vsub.s32 %v978, %v980
  %v982 = vrot.slane %v975, %v981
  %v984 = vunpack.c.l.s4 1966171168
  %v985 = vunpack.c.0.s8 %v984
  %v986 = vlaneseq
  %v987 = vshrl.u32 %v986, 7
  %v988 = vsub.s32 %v985, %v987
  %v989 = vrot.slane %v982, %v988
  %v991 = vadd.f32 %v893, %v989
  %v992 = vmax.f32 %v991, 0.0
  %v994 = vlaneseq
  %v995 = vshrl.u32 %v994, 7
  %v996 = vsub.s32 0, %v995
  %v997 = vrot.slane %v992, %v996
  %v998 = vlaneseq
  %v999 = vshrl.u32 %v998, 7
  %v1000 = vsub.s32 1, %v999
  %v1001 = vrot.slane %v992, %v1000
  %1004 = vmatprep.subr.mxu0 0.0
  %1005 = vmatpush1.msra.mxu0 %v75
  %1006 = vmatprep.subr.mxu0 0.0
  %1007 = vmatpush1.msra.mxu0 %v76
  %1008 = vmatprep.subr.mxu0 0.0
  %1009 = vmatpush1.msra.mxu0 %v77
  %1010 = vmatprep.subr.mxu0 0.0
  %1011 = vmatpush1.msra.mxu0 %v78
  %1012 = vmatprep.subr.mxu0 0.0
  %1013 = vmatpush1.msra.mxu0 %v79
  %1014 = vmatprep.subr.mxu0 0.0
  %1015 = vmatpush1.msra.mxu0 %v80
  %1016 = vmatprep.subr.mxu0 0.0
  %1017 = vmatpush1.msra.mxu0 %v81
  %1018 = vmatprep.subr.mxu0 0.0
  %1019 = vmatpush1.msra.mxu0 %v82
  %1020 = vmatprep.subr.mxu0 0.0
  %1021 = vmatpush1.msra.mxu0 %v83
  %1022 = vmatprep.subr.mxu0 0.0
  %1023 = vmatpush1.msra.mxu0 %v84
  %1024 = vmatprep.subr.mxu0 0.0
  %1025 = vmatpush1.msra.mxu0 %v85
  %1026 = vmatprep.subr.mxu0 0.0
  %1027 = vmatpush1.msra.mxu0 %v86
  %1028 = vmatprep.subr.mxu0 0.0
  %1029 = vmatpush1.msra.mxu0 %v87
  %1030 = vmatprep.subr.mxu0 0.0
  %1031 = vmatpush1.msra.mxu0 %v88
  %1032 = vmatprep.subr.mxu0 0.0
  %1033 = vmatpush1.msra.mxu0 %v89
  %1034 = vmatprep.subr.mxu0 0.0
  %1035 = vmatpush1.msra.mxu0 %v90
  %1036 = vmatprep.subr.mxu0 0.0
  %1037 = vmatpush1.msra.mxu0 %v91
  %1038 = vmatprep.subr.mxu0 0.0
  %1039 = vmatpush1.msra.mxu0 %v92
  %1040 = vmatprep.subr.mxu0 0.0
  %1041 = vmatpush1.msra.mxu0 %v93
  %1042 = vmatprep.subr.mxu0 0.0
  %1043 = vmatpush1.msra.mxu0 %v94
  %1044 = vmatprep.subr.mxu0 0.0
  %1045 = vmatpush1.msra.mxu0 %v95
  %1046 = vmatprep.subr.mxu0 0.0
  %1047 = vmatpush1.msra.mxu0 %v96
  %1048 = vmatprep.subr.mxu0 0.0
  %1049 = vmatpush1.msra.mxu0 %v97
  %1050 = vmatprep.subr.mxu0 0.0
  %1051 = vmatpush1.msra.mxu0 %v98
  %1052 = vmatprep.subr.mxu0 0.0
  %1053 = vmatpush1.msra.mxu0 %v99
  %1054 = vmatprep.subr.mxu0 0.0
  %1055 = vmatpush1.msra.mxu0 %v100
  %1056 = vmatprep.subr.mxu0 0.0
  %1057 = vmatpush1.msra.mxu0 %v101
  %1058 = vmatprep.subr.mxu0 0.0
  %1059 = vmatpush1.msra.mxu0 %v102
  %1060 = vmatprep.subr.mxu0 0.0
  %1061 = vmatpush1.msra.mxu0 %v103
  %1062 = vmatprep.subr.mxu0 0.0
  %1063 = vmatpush1.msra.mxu0 %v104
  %1064 = vmatprep.subr.mxu0 0.0
  %1065 = vmatpush1.msra.mxu0 %v105
  %1066 = vmatprep.subr.mxu0 0.0
  %1067 = vmatpush1.msra.mxu0 %v106
  %1068 = vmatprep.mubr.f32.mxu0 %v1001
  %1069 = vmatmul.mubr.f32.gmra.mrb[0].mxu0 %v997
  %v1070 = vpop.f32.mrb[0].mxu0
  %v1071 = vadd.f32 %v107, %v1070
  %v1072 = vpop.f32.mrb[0].mxu0
  %1073 = vdwg.mxu0
  %v1074 = vmax.f32 %v1071, 0.0
  %vm1075 = vcmask 523264
  %v1077 = vsel %vm1075, %v1074, 0
  %1079 = vmatprep.subr.mxu0 0.0
  %1080 = vmatpush1.msra.mxu0 %v108
  %1081 = vmatprep.subr.mxu0 0.0
  %1082 = vmatpush1.msra.mxu0 %v109
  %1083 = vmatprep.subr.mxu0 0.0
  %1084 = vmatpush1.msra.mxu0 %v110
  %1085 = vmatprep.subr.mxu0 0.0
  %1086 = vmatpush1.msra.mxu0 %v111
  %1087 = vmatprep.subr.mxu0 0.0
  %1088 = vmatpush1.msra.mxu0 %v112
  %1089 = vmatprep.subr.mxu0 0.0
  %1090 = vmatpush1.msra.mxu0 %v113
  %1091 = vmatprep.subr.mxu0 0.0
  %1092 = vmatpush1.msra.mxu0 %v114
  %1093 = vmatprep.subr.mxu0 0.0
  %1094 = vmatpush1.msra.mxu0 %v115
  %1095 = vmatprep.subr.mxu0 0.0
  %1096 = vmatpush1.msra.mxu0 0.0
  %1097 = vmatprep.subr.mxu0 0.0
  %1098 = vmatpush1.msra.mxu0 0.0
  %1099 = vmatprep.subr.mxu0 0.0
  %1100 = vmatpush1.msra.mxu0 0.0
  %1101 = vmatprep.subr.mxu0 0.0
  %1102 = vmatpush1.msra.mxu0 0.0
  %1103 = vmatprep.subr.mxu0 0.0
  %1104 = vmatpush1.msra.mxu0 0.0
  %1105 = vmatprep.subr.mxu0 0.0
  %1106 = vmatpush1.msra.mxu0 0.0
  %1107 = vmatprep.subr.mxu0 0.0
  %1108 = vmatpush1.msra.mxu0 0.0
  %1109 = vmatprep.subr.mxu0 0.0
  %1110 = vmatpush1.msra.mxu0 0.0
  %1111 = vmatprep.subr.mxu0 0.0
  %1112 = vmatpush1.msra.mxu0 0.0
  %1113 = vmatprep.subr.mxu0 0.0
  %1114 = vmatpush1.msra.mxu0 0.0
  %1115 = vmatprep.subr.mxu0 0.0
  %1116 = vmatpush1.msra.mxu0 0.0
  %1117 = vmatprep.subr.mxu0 0.0
  %1118 = vmatpush1.msra.mxu0 0.0
  %1119 = vmatprep.subr.mxu0 0.0
  %1120 = vmatpush1.msra.mxu0 0.0
  %1121 = vmatprep.subr.mxu0 0.0
  %1122 = vmatpush1.msra.mxu0 0.0
  %1123 = vmatprep.subr.mxu0 0.0
  %1124 = vmatpush1.msra.mxu0 0.0
  %1125 = vmatprep.subr.mxu0 0.0
  %1126 = vmatpush1.msra.mxu0 0.0
  %1127 = vmatprep.subr.mxu0 0.0
  %1128 = vmatpush1.msra.mxu0 0.0
  %1129 = vmatprep.subr.mxu0 0.0
  %1130 = vmatpush1.msra.mxu0 0.0
  %1131 = vmatprep.subr.mxu0 0.0
  %1132 = vmatpush1.msra.mxu0 0.0
  %1133 = vmatprep.subr.mxu0 0.0
  %1134 = vmatpush1.msra.mxu0 0.0
  %1135 = vmatprep.subr.mxu0 0.0
  %1136 = vmatpush1.msra.mxu0 0.0
  %1137 = vmatprep.subr.mxu0 0.0
  %1138 = vmatpush1.msra.mxu0 0.0
  %1139 = vmatprep.subr.mxu0 0.0
  %1140 = vmatpush1.msra.mxu0 0.0
  %1141 = vmatprep.subr.mxu0 0.0
  %1142 = vmatpush1.msra.mxu0 0.0
  %1143 = vmatprep.mubr.f32.mxu0 0.0
  %1144 = vmatmul.mubr.f32.gmra.mrb[0].mxu0 %v1077
  %v1145 = vpop.f32.mrb[0].mxu0
  %v1146 = vadd.f32 %v116, %v1145
  %v1147 = vpop.f32.mrb[0].mxu0
  %1148 = vdwg.mxu0
  %vm1149 = vcmask 0
  %1150 = vst.msk [vmem:[%s17] sm:$0x1] %vm1149, %v1146
  %s1151 = scalar_lea.vmem %s1, 1
  %v1152 = vld [vmem:[%s1151] sm:$0x1]
  %s1153 = scalar_lea.vmem %s0, 16
  %v1154 = vld [vmem:[%s1153] sm:$0xff]
  %v1155 = vld [vmem:[%s1153 + $0x8] sm:$0xff]
  %v1157 = vsel %vm127, %v1152, 0
  %1159 = vmatprep.subr.mxu0 0.0
  %1160 = vmatpush1.msra.mxu0 %v1157
  %1161 = vmatprep.subr.mxu0 0.0
  %1162 = vmatpush1.msra.mxu0 0.0
  %1163 = vmatprep.subr.mxu0 0.0
  %1164 = vmatpush1.msra.mxu0 0.0
  %1165 = vmatprep.subr.mxu0 0.0
  %1166 = vmatpush1.msra.mxu0 0.0
  %1167 = vmatprep.subr.mxu0 0.0
  %1168 = vmatpush1.msra.mxu0 0.0
  %1169 = vmatprep.subr.mxu0 0.0
  %1170 = vmatpush1.msra.mxu0 0.0
  %1171 = vmatprep.subr.mxu0 0.0
  %1172 = vmatpush1.msra.mxu0 0.0
  %1173 = vmatprep.subr.mxu0 0.0
  %1174 = vmatpush1.msra.mxu0 0.0
  %1175 = vmatprep.subr.mxu0 0.0
  %1176 = vmatpush1.msra.mxu0 0.0
  %1177 = vmatprep.subr.mxu0 0.0
  %1178 = vmatpush1.msra.mxu0 0.0
  %1179 = vmatprep.subr.mxu0 0.0
  %1180 = vmatpush1.msra.mxu0 0.0
  %1181 = vmatprep.subr.mxu0 0.0
  %1182 = vmatpush1.msra.mxu0 0.0
  %1183 = vmatprep.subr.mxu0 0.0
  %1184 = vmatpush1.msra.mxu0 0.0
  %1185 = vmatprep.subr.mxu0 0.0
  %1186 = vmatpush1.msra.mxu0 0.0
  %1187 = vmatprep.subr.mxu0 0.0
  %1188 = vmatpush1.msra.mxu0 0.0
  %1189 = vmatprep.subr.mxu0 0.0
  %1190 = vmatpush1.msra.mxu0 0.0
  %1191 = vmatprep.subr.mxu0 0.0
  %1192 = vmatpush1.msra.mxu0 0.0
  %1193 = vmatprep.subr.mxu0 0.0
  %1194 = vmatpush1.msra.mxu0 0.0
  %1195 = vmatprep.subr.mxu0 0.0
  %1196 = vmatpush1.msra.mxu0 0.0
  %1197 = vmatprep.subr.mxu0 0.0
  %1198 = vmatpush1.msra.mxu0 0.0
  %1199 = vmatprep.subr.mxu0 0.0
  %1200 = vmatpush1.msra.mxu0 0.0
  %1201 = vmatprep.subr.mxu0 0.0
  %1202 = vmatpush1.msra.mxu0 0.0
  %1203 = vmatprep.subr.mxu0 0.0
  %1204 = vmatpush1.msra.mxu0 0.0
  %1205 = vmatprep.subr.mxu0 0.0
  %1206 = vmatpush1.msra.mxu0 0.0
  %1207 = vmatprep.subr.mxu0 0.0
  %1208 = vmatpush1.msra.mxu0 0.0
  %1209 = vmatprep.subr.mxu0 0.0
  %1210 = vmatpush1.msra.mxu0 0.0
  %1211 = vmatprep.subr.mxu0 0.0
  %1212 = vmatpush1.msra.mxu0 0.0
  %1213 = vmatprep.subr.mxu0 0.0
  %1214 = vmatpush1.msra.mxu0 0.0
  %1215 = vmatprep.subr.mxu0 0.0
  %1216 = vmatpush1.msra.mxu0 0.0
  %1217 = vmatprep.subr.mxu0 0.0
  %1218 = vmatpush1.msra.mxu0 0.0
  %1219 = vmatprep.subr.mxu0 0.0
  %1220 = vmatpush1.msra.mxu0 0.0
  %1221 = vmatprep.subr.mxu0 0.0
  %1222 = vmatpush1.msra.mxu0 0.0
  %1223 = vmatprep.mubr.f32.mxu0 0.0
  %1224 = vmatmul.mubr.f32.gmra.mrb[0].mxu0 %v122
  %v1225 = vpop.f32.mrb[0].mxu0
  %v1226 = vadd.f32 0.0, %v1225
  %v1227 = vpop.f32.mrb[0].mxu0
  %1228 = vmatprep.mubr.f32.mxu0 0.0
  %1229 = vmatmul.mubr.f32.gmra.mrb[0].mxu0 %v125
  %v1230 = vpop.f32.mrb[0].mxu0
  %v1231 = vadd.f32 0.0, %v1230
  %v1232 = vpop.f32.mrb[0].mxu0
  %1233 = vdwg.mxu0
  %1234 = vmatprep.subr.mxu0 0.0
  %1235 = vmatpush1.msra.mxu0 %v1157
  %1236 = vmatprep.subr.mxu0 0.0
  %1237 = vmatpush1.msra.mxu0 0.0
  %1238 = vmatprep.subr.mxu0 0.0
  %1239 = vmatpush1.msra.mxu0 0.0
  %1240 = vmatprep.subr.mxu0 0.0
  %1241 = vmatpush1.msra.mxu0 0.0
  %1242 = vmatprep.subr.mxu0 0.0
  %1243 = vmatpush1.msra.mxu0 0.0
  %1244 = vmatprep.subr.mxu0 0.0
  %1245 = vmatpush1.msra.mxu0 0.0
  %1246 = vmatprep.subr.mxu0 0.0
  %1247 = vmatpush1.msra.mxu0 0.0
  %1248 = vmatprep.subr.mxu0 0.0
  %1249 = vmatpush1.msra.mxu0 0.0
  %1250 = vmatprep.subr.mxu0 0.0
  %1251 = vmatpush1.msra.mxu0 0.0
  %1252 = vmatprep.subr.mxu0 0.0
  %1253 = vmatpush1.msra.mxu0 0.0
  %1254 = vmatprep.subr.mxu0 0.0
  %1255 = vmatpush1.msra.mxu0 0.0
  %1256 = vmatprep.subr.mxu0 0.0
  %1257 = vmatpush1.msra.mxu0 0.0
  %1258 = vmatprep.subr.mxu0 0.0
  %1259 = vmatpush1.msra.mxu0 0.0
  %1260 = vmatprep.subr.mxu0 0.0
  %1261 = vmatpush1.msra.mxu0 0.0
  %1262 = vmatprep.subr.mxu0 0.0
  %1263 = vmatpush1.msra.mxu0 0.0
  %1264 = vmatprep.subr.mxu0 0.0
  %1265 = vmatpush1.msra.mxu0 0.0
  %1266 = vmatprep.subr.mxu0 0.0
  %1267 = vmatpush1.msra.mxu0 0.0
  %1268 = vmatprep.subr.mxu0 0.0
  %1269 = vmatpush1.msra.mxu0 0.0
  %1270 = vmatprep.subr.mxu0 0.0
  %1271 = vmatpush1.msra.mxu0 0.0
  %1272 = vmatprep.subr.mxu0 0.0
  %1273 = vmatpush1.msra.mxu0 0.0
  %1274 = vmatprep.subr.mxu0 0.0
  %1275 = vmatpush1.msra.mxu0 0.0
  %1276 = vmatprep.subr.mxu0 0.0
  %1277 = vmatpush1.msra.mxu0 0.0
  %1278 = vmatprep.subr.mxu0 0.0
  %1279 = vmatpush1.msra.mxu0 0.0
  %1280 = vmatprep.subr.mxu0 0.0
  %1281 = vmatpush1.msra.mxu0 0.0
  %1282 = vmatprep.subr.mxu0 0.0
  %1283 = vmatpush1.msra.mxu0 0.0
  %1284 = vmatprep.subr.mxu0 0.0
  %1285 = vmatpush1.msra.mxu0 0.0
  %1286 = vmatprep.subr.mxu0 0.0
  %1287 = vmatpush1.msra.mxu0 0.0
  %1288 = vmatprep.subr.mxu0 0.0
  %1289 = vmatpush1.msra.mxu0 0.0
  %1290 = vmatprep.subr.mxu0 0.0
  %1291 = vmatpush1.msra.mxu0 0.0
  %1292 = vmatprep.subr.mxu0 0.0
  %1293 = vmatpush1.msra.mxu0 0.0
  %1294 = vmatprep.subr.mxu0 0.0
  %1295 = vmatpush1.msra.mxu0 0.0
  %1296 = vmatprep.subr.mxu0 0.0
  %1297 = vmatpush1.msra.mxu0 0.0
  %1298 = vmatprep.mubr.f32.mxu0 0.0
  %1299 = vmatmul.mubr.f32.gmra.mrb[0].mxu0 %v207
  %v1300 = vpop.f32.mrb[0].mxu0
  %v1301 = vadd.f32 0.0, %v1300
  %v1302 = vpop.f32.mrb[0].mxu0
  %1303 = vmatprep.mubr.f32.mxu0 0.0
  %1304 = vmatmul.mubr.f32.gmra.mrb[0].mxu0 %v210
  %v1305 = vpop.f32.mrb[0].mxu0
  %v1306 = vadd.f32 0.0, %v1305
  %v1307 = vpop.f32.mrb[0].mxu0
  %1308 = vdwg.mxu0
  %v1310 = vsel %vm287, %v1226, 0
  %v1313 = vsel %vm287, %v1231, 0
  %1315 = vmatprep.subr.mxu0 0.0
  %1316 = vmatpush1.msra.mxu0 %v1154
  %1317 = vmatprep.subr.mxu0 0.0
  %1318 = vmatpush1.msra.mxu0 %v1155
  %1319 = vmatprep.subr.mxu0 0.0
  %1320 = vmatpush1.msra.mxu0 0.0
  %1321 = vmatprep.subr.mxu0 0.0
  %1322 = vmatpush1.msra.mxu0 0.0
  %1323 = vmatprep.subr.mxu0 0.0
  %1324 = vmatpush1.msra.mxu0 0.0
  %1325 = vmatprep.subr.mxu0 0.0
  %1326 = vmatpush1.msra.mxu0 0.0
  %1327 = vmatprep.subr.mxu0 0.0
  %1328 = vmatpush1.msra.mxu0 0.0
  %1329 = vmatprep.subr.mxu0 0.0
  %1330 = vmatpush1.msra.mxu0 0.0
  %1331 = vmatprep.subr.mxu0 0.0
  %1332 = vmatpush1.msra.mxu0 0.0
  %1333 = vmatprep.subr.mxu0 0.0
  %1334 = vmatpush1.msra.mxu0 0.0
  %1335 = vmatprep.subr.mxu0 0.0
  %1336 = vmatpush1.msra.mxu0 0.0
  %1337 = vmatprep.subr.mxu0 0.0
  %1338 = vmatpush1.msra.mxu0 0.0
  %1339 = vmatprep.subr.mxu0 0.0
  %1340 = vmatpush1.msra.mxu0 0.0
  %1341 = vmatprep.subr.mxu0 0.0
  %1342 = vmatpush1.msra.mxu0 0.0
  %1343 = vmatprep.subr.mxu0 0.0
  %1344 = vmatpush1.msra.mxu0 0.0
  %1345 = vmatprep.subr.mxu0 0.0
  %1346 = vmatpush1.msra.mxu0 0.0
  %1347 = vmatprep.subr.mxu0 0.0
  %1348 = vmatpush1.msra.mxu0 0.0
  %1349 = vmatprep.subr.mxu0 0.0
  %1350 = vmatpush1.msra.mxu0 0.0
  %1351 = vmatprep.subr.mxu0 0.0
  %1352 = vmatpush1.msra.mxu0 0.0
  %1353 = vmatprep.subr.mxu0 0.0
  %1354 = vmatpush1.msra.mxu0 0.0
  %1355 = vmatprep.subr.mxu0 0.0
  %1356 = vmatpush1.msra.mxu0 0.0
  %1357 = vmatprep.subr.mxu0 0.0
  %1358 = vmatpush1.msra.mxu0 0.0
  %1359 = vmatprep.subr.mxu0 0.0
  %1360 = vmatpush1.msra.mxu0 0.0
  %1361 = vmatprep.subr.mxu0 0.0
  %1362 = vmatpush1.msra.mxu0 0.0
  %1363 = vmatprep.subr.mxu0 0.0
  %1364 = vmatpush1.msra.mxu0 0.0
  %1365 = vmatprep.subr.mxu0 0.0
  %1366 = vmatpush1.msra.mxu0 0.0
  %1367 = vmatprep.subr.mxu0 0.0
  %1368 = vmatpush1.msra.mxu0 0.0
  %1369 = vmatprep.subr.mxu0 0.0
  %1370 = vmatpush1.msra.mxu0 0.0
  %1371 = vmatprep.subr.mxu0 0.0
  %1372 = vmatpush1.msra.mxu0 0.0
  %1373 = vmatprep.subr.mxu0 0.0
  %1374 = vmatpush1.msra.mxu0 0.0
  %1375 = vmatprep.subr.mxu0 0.0
  %1376 = vmatpush1.msra.mxu0 0.0
  %1377 = vmatprep.subr.mxu0 0.0
  %1378 = vmatpush1.msra.mxu0 0.0
  %1379 = vmatprep.mubr.f32.mxu0 0.0
  %1380 = vmatmul.mubr.f32.gmra.mrb[0].mxu0 %v1310
  %v1381 = vpop.f32.mrb[0].mxu0
  %v1382 = vadd.f32 %v1301, %v1381
  %v1383 = vpop.f32.mrb[0].mxu0
  %1384 = vmatprep.mubr.f32.mxu0 0.0
  %1385 = vmatmul.mubr.f32.gmra.mrb[0].mxu0 %v1313
  %v1386 = vpop.f32.mrb[0].mxu0
  %v1387 = vadd.f32 %v1306, %v1386
  %v1388 = vpop.f32.mrb[0].mxu0
  %1389 = vdwg.mxu0
  %v1390 = vadd.f32 %v1382, %v372
  %v1391 = vadd.f32 %v1387, %v377
  %v1392 = vmax.f32 %v1390, 0.0
  %v1393 = vmax.f32 %v1391, 0.0
  %v1394 = vsel %vm287, %v1392, 0.0
  %v1395 = vsel %vm287, %v1393, 0.0
  %v1396 = vadd.f32 %v1394, %v1395
  %1397 = vadd.xlane.f32.xlu0 %v1396
  %v1398 = vpop.xlane.xlu0 %1397
  %v1399 = vrot.slane %v1398, 4
  %v1400 = vadd.f32 %v1398, %v1399
  %v1401 = vrot.slane %v1400, 2
  %v1402 = vadd.f32 %v1400, %v1401
  %v1403 = vrot.slane %v1402, 1
  %v1404 = vadd.f32 %v1402, %v1403
  %s1405 = vtos %v1404
  %v1406 = vstv %s1405
  %v1407 = vmul.f32 %v1406, %v396
  %v1408 = vsub.f32 %v1392, %v1407
  %v1409 = vsub.f32 %v1393, %v1407
  %v1410 = vmul.f32 %v1408, %v1408
  %v1411 = vmul.f32 %v1409, %v1409
  %v1412 = vsel %vm287, %v1410, 0.0
  %v1413 = vsel %vm287, %v1411, 0.0
  %v1414 = vadd.f32 %v1412, %v1413
  %1415 = vadd.xlane.f32.xlu0 %v1414
  %v1416 = vpop.xlane.xlu0 %1415
  %v1417 = vrot.slane %v1416, 4
  %v1418 = vadd.f32 %v1416, %v1417
  %v1419 = vrot.slane %v1418, 2
  %v1420 = vadd.f32 %v1418, %v1419
  %v1421 = vrot.slane %v1420, 1
  %v1422 = vadd.f32 %v1420, %v1421
  %s1423 = vtos %v1422
  %v1424 = vstv %s1423
  %v1425 = vmul.f32 %v1424, %v396
  %v1426 = vadd.f32 %v1425, 1e-05
  %v1427 = vrsqrt.pop %v1426
  %v1428 = vmul.f32 %v1408, %v1427
  %v1429 = vmul.f32 %v1409, %v1427
  %v1430 = vmul.f32 %v1428, %v64
  %v1431 = vmul.f32 %v1429, %v65
  %v1432 = vadd.f32 %v1430, %v66
  %v1433 = vadd.f32 %v1431, %v67
  %1434 = vmatprep.subr.mxu0 0.0
  %1435 = vmatpush1.msra.mxu0 %v1432
  %1436 = vmatprep.subr.mxu0 0.0
  %1437 = vmatpush1.msra.mxu0 %v1433
  %1438 = vmatprep.subr.mxu0 0.0
  %1439 = vmatpush1.msra.mxu0 0.0
  %1440 = vmatprep.subr.mxu0 0.0
  %1441 = vmatpush1.msra.mxu0 0.0
  %1442 = vmatprep.subr.mxu0 0.0
  %1443 = vmatpush1.msra.mxu0 0.0
  %1444 = vmatprep.subr.mxu0 0.0
  %1445 = vmatpush1.msra.mxu0 0.0
  %1446 = vmatprep.subr.mxu0 0.0
  %1447 = vmatpush1.msra.mxu0 0.0
  %1448 = vmatprep.subr.mxu0 0.0
  %1449 = vmatpush1.msra.mxu0 0.0
  %1450 = vmatprep.subr.mxu0 0.0
  %1451 = vmatpush1.msra.mxu0 0.0
  %1452 = vmatprep.subr.mxu0 0.0
  %1453 = vmatpush1.msra.mxu0 0.0
  %1454 = vmatprep.subr.mxu0 0.0
  %1455 = vmatpush1.msra.mxu0 0.0
  %1456 = vmatprep.subr.mxu0 0.0
  %1457 = vmatpush1.msra.mxu0 0.0
  %1458 = vmatprep.subr.mxu0 0.0
  %1459 = vmatpush1.msra.mxu0 0.0
  %1460 = vmatprep.subr.mxu0 0.0
  %1461 = vmatpush1.msra.mxu0 0.0
  %1462 = vmatprep.subr.mxu0 0.0
  %1463 = vmatpush1.msra.mxu0 0.0
  %1464 = vmatprep.subr.mxu0 0.0
  %1465 = vmatpush1.msra.mxu0 0.0
  %1466 = vmatprep.subr.mxu0 0.0
  %1467 = vmatpush1.msra.mxu0 0.0
  %1468 = vmatprep.subr.mxu0 0.0
  %1469 = vmatpush1.msra.mxu0 0.0
  %1470 = vmatprep.subr.mxu0 0.0
  %1471 = vmatpush1.msra.mxu0 0.0
  %1472 = vmatprep.subr.mxu0 0.0
  %1473 = vmatpush1.msra.mxu0 0.0
  %1474 = vmatprep.subr.mxu0 0.0
  %1475 = vmatpush1.msra.mxu0 0.0
  %1476 = vmatprep.subr.mxu0 0.0
  %1477 = vmatpush1.msra.mxu0 0.0
  %1478 = vmatprep.subr.mxu0 0.0
  %1479 = vmatpush1.msra.mxu0 0.0
  %1480 = vmatprep.subr.mxu0 0.0
  %1481 = vmatpush1.msra.mxu0 0.0
  %1482 = vmatprep.subr.mxu0 0.0
  %1483 = vmatpush1.msra.mxu0 0.0
  %1484 = vmatprep.subr.mxu0 0.0
  %1485 = vmatpush1.msra.mxu0 0.0
  %1486 = vmatprep.subr.mxu0 0.0
  %1487 = vmatpush1.msra.mxu0 0.0
  %1488 = vmatprep.subr.mxu0 0.0
  %1489 = vmatpush1.msra.mxu0 0.0
  %1490 = vmatprep.subr.mxu0 0.0
  %1491 = vmatpush1.msra.mxu0 0.0
  %1492 = vmatprep.subr.mxu0 0.0
  %1493 = vmatpush1.msra.mxu0 0.0
  %1494 = vmatprep.subr.mxu0 0.0
  %1495 = vmatpush1.msra.mxu0 0.0
  %1496 = vmatprep.subr.mxu0 0.0
  %1497 = vmatpush1.msra.mxu0 0.0
  %1498 = vmatprep.mubr.f32.mxu0 0.0
  %1499 = vmatmul.mubr.f32.gmra.mrb[0].mxu0 %v435
  %v1500 = vpop.f32.mrb[0].mxu0
  %v1501 = vadd.f32 %v427, %v1500
  %v1502 = vpop.f32.mrb[0].mxu0
  %1503 = vmatprep.mubr.f32.mxu0 0.0
  %1504 = vmatmul.mubr.f32.gmra.mrb[0].mxu0 %v438
  %v1505 = vpop.f32.mrb[0].mxu0
  %v1506 = vadd.f32 %v432, %v1505
  %v1507 = vpop.f32.mrb[0].mxu0
  %1508 = vdwg.mxu0
  %v1509 = vmax.f32 %v1501, 0.0
  %v1510 = vmax.f32 %v1506, 0.0
  %v1512 = vsel %vm526, %v1510, 0
  %1514 = vmatprep.subr.mxu0 0.0
  %1515 = vmatpush1.msra.mxu0 %v1509
  %1516 = vmatprep.subr.mxu0 0.0
  %1517 = vmatpush1.msra.mxu0 %v1512
  %1518 = vmatprep.subr.mxu0 0.0
  %1519 = vmatpush1.msra.mxu0 0.0
  %1520 = vmatprep.subr.mxu0 0.0
  %1521 = vmatpush1.msra.mxu0 0.0
  %1522 = vmatprep.subr.mxu0 0.0
  %1523 = vmatpush1.msra.mxu0 0.0
  %1524 = vmatprep.subr.mxu0 0.0
  %1525 = vmatpush1.msra.mxu0 0.0
  %1526 = vmatprep.subr.mxu0 0.0
  %1527 = vmatpush1.msra.mxu0 0.0
  %1528 = vmatprep.subr.mxu0 0.0
  %1529 = vmatpush1.msra.mxu0 0.0
  %1530 = vmatprep.subr.mxu0 0.0
  %1531 = vmatpush1.msra.mxu0 0.0
  %1532 = vmatprep.subr.mxu0 0.0
  %1533 = vmatpush1.msra.mxu0 0.0
  %1534 = vmatprep.subr.mxu0 0.0
  %1535 = vmatpush1.msra.mxu0 0.0
  %1536 = vmatprep.subr.mxu0 0.0
  %1537 = vmatpush1.msra.mxu0 0.0
  %1538 = vmatprep.subr.mxu0 0.0
  %1539 = vmatpush1.msra.mxu0 0.0
  %1540 = vmatprep.subr.mxu0 0.0
  %1541 = vmatpush1.msra.mxu0 0.0
  %1542 = vmatprep.subr.mxu0 0.0
  %1543 = vmatpush1.msra.mxu0 0.0
  %1544 = vmatprep.subr.mxu0 0.0
  %1545 = vmatpush1.msra.mxu0 0.0
  %1546 = vmatprep.subr.mxu0 0.0
  %1547 = vmatpush1.msra.mxu0 0.0
  %1548 = vmatprep.subr.mxu0 0.0
  %1549 = vmatpush1.msra.mxu0 0.0
  %1550 = vmatprep.subr.mxu0 0.0
  %1551 = vmatpush1.msra.mxu0 0.0
  %1552 = vmatprep.subr.mxu0 0.0
  %1553 = vmatpush1.msra.mxu0 0.0
  %1554 = vmatprep.subr.mxu0 0.0
  %1555 = vmatpush1.msra.mxu0 0.0
  %1556 = vmatprep.subr.mxu0 0.0
  %1557 = vmatpush1.msra.mxu0 0.0
  %1558 = vmatprep.subr.mxu0 0.0
  %1559 = vmatpush1.msra.mxu0 0.0
  %1560 = vmatprep.subr.mxu0 0.0
  %1561 = vmatpush1.msra.mxu0 0.0
  %1562 = vmatprep.subr.mxu0 0.0
  %1563 = vmatpush1.msra.mxu0 0.0
  %1564 = vmatprep.subr.mxu0 0.0
  %1565 = vmatpush1.msra.mxu0 0.0
  %1566 = vmatprep.subr.mxu0 0.0
  %1567 = vmatpush1.msra.mxu0 0.0
  %1568 = vmatprep.subr.mxu0 0.0
  %1569 = vmatpush1.msra.mxu0 0.0
  %1570 = vmatprep.subr.mxu0 0.0
  %1571 = vmatpush1.msra.mxu0 0.0
  %1572 = vmatprep.subr.mxu0 0.0
  %1573 = vmatpush1.msra.mxu0 0.0
  %1574 = vmatprep.subr.mxu0 0.0
  %1575 = vmatpush1.msra.mxu0 0.0
  %1576 = vmatprep.subr.mxu0 0.0
  %1577 = vmatpush1.msra.mxu0 0.0
  %1578 = vmatprep.mubr.f32.mxu0 0.0
  %1579 = vmatmul.mubr.f32.gmra.mrb[0].mxu0 %v524
  %v1580 = vpop.f32.mrb[0].mxu0
  %v1581 = vadd.f32 %v520, %v1580
  %v1582 = vpop.f32.mrb[0].mxu0
  %1583 = vdwg.mxu0
  %v1584 = vmax.f32 %v1581, 0.0
  %v1585 = vld [vmem:[%s11] sm:$0xff]
  %v1586 = vld [vmem:[%s11 + $0x8] sm:$0xff]
  %v1587 = vld [vmem:[%s11 + $0x10] sm:$0xff]
  %v1588 = vld [vmem:[%s11 + $0x18] sm:$0xff]
  %v1590 = vsel %vm287, %v1584, 0
  %1592 = vmatprep.subr.mxu0 %v1586
  %1593 = vmatpush1.msra.mxu0 %v1585
  %1594 = vmatprep.subr.mxu0 %v1588
  %1595 = vmatpush1.msra.mxu0 %v1587
  %1596 = vmatprep.subr.mxu0 0.0
  %1597 = vmatpush1.msra.mxu0 0.0
  %1598 = vmatprep.subr.mxu0 0.0
  %1599 = vmatpush1.msra.mxu0 0.0
  %1600 = vmatprep.subr.mxu0 0.0
  %1601 = vmatpush1.msra.mxu0 0.0
  %1602 = vmatprep.subr.mxu0 0.0
  %1603 = vmatpush1.msra.mxu0 0.0
  %1604 = vmatprep.subr.mxu0 0.0
  %1605 = vmatpush1.msra.mxu0 0.0
  %1606 = vmatprep.subr.mxu0 0.0
  %1607 = vmatpush1.msra.mxu0 0.0
  %1608 = vmatprep.subr.mxu0 0.0
  %1609 = vmatpush1.msra.mxu0 0.0
  %1610 = vmatprep.subr.mxu0 0.0
  %1611 = vmatpush1.msra.mxu0 0.0
  %1612 = vmatprep.subr.mxu0 0.0
  %1613 = vmatpush1.msra.mxu0 0.0
  %1614 = vmatprep.subr.mxu0 0.0
  %1615 = vmatpush1.msra.mxu0 0.0
  %1616 = vmatprep.subr.mxu0 0.0
  %1617 = vmatpush1.msra.mxu0 0.0
  %1618 = vmatprep.subr.mxu0 0.0
  %1619 = vmatpush1.msra.mxu0 0.0
  %1620 = vmatprep.subr.mxu0 0.0
  %1621 = vmatpush1.msra.mxu0 0.0
  %1622 = vmatprep.subr.mxu0 0.0
  %1623 = vmatpush1.msra.mxu0 0.0
  %1624 = vmatprep.subr.mxu0 0.0
  %1625 = vmatpush1.msra.mxu0 0.0
  %1626 = vmatprep.subr.mxu0 0.0
  %1627 = vmatpush1.msra.mxu0 0.0
  %1628 = vmatprep.subr.mxu0 0.0
  %1629 = vmatpush1.msra.mxu0 0.0
  %1630 = vmatprep.subr.mxu0 0.0
  %1631 = vmatpush1.msra.mxu0 0.0
  %1632 = vmatprep.subr.mxu0 0.0
  %1633 = vmatpush1.msra.mxu0 0.0
  %1634 = vmatprep.subr.mxu0 0.0
  %1635 = vmatpush1.msra.mxu0 0.0
  %1636 = vmatprep.subr.mxu0 0.0
  %1637 = vmatpush1.msra.mxu0 0.0
  %1638 = vmatprep.subr.mxu0 0.0
  %1639 = vmatpush1.msra.mxu0 0.0
  %1640 = vmatprep.subr.mxu0 0.0
  %1641 = vmatpush1.msra.mxu0 0.0
  %1642 = vmatprep.subr.mxu0 0.0
  %1643 = vmatpush1.msra.mxu0 0.0
  %1644 = vmatprep.subr.mxu0 0.0
  %1645 = vmatpush1.msra.mxu0 0.0
  %1646 = vmatprep.subr.mxu0 0.0
  %1647 = vmatpush1.msra.mxu0 0.0
  %1648 = vmatprep.subr.mxu0 0.0
  %1649 = vmatpush1.msra.mxu0 0.0
  %1650 = vmatprep.subr.mxu0 0.0
  %1651 = vmatpush1.msra.mxu0 0.0
  %1652 = vmatprep.subr.mxu0 0.0
  %1653 = vmatpush1.msra.mxu0 0.0
  %1654 = vmatprep.subr.mxu0 0.0
  %1655 = vmatpush1.msra.mxu0 0.0
  %1656 = vmatprep.mubr.f32.mxu0 0.0
  %1657 = vmatmul.mubr.f32.gmra.mrb[0].mxu0 %v1590
  %v1658 = vpop.f32.mrb[0].mxu0
  %v1659 = vadd.f32 0.0, %v1658
  %v1660 = vpop.f32.mrb[0].mxu0
  %v1661 = vadd.f32 0.0, %v1660
  %1662 = vdwg.mxu0
  %v1665 = vcombine.low %v1659, %v1661
  %v1667 = vunpack.c.l.s4 1966171168
  %v1668 = vunpack.c.0.s8 %v1667
  %v1669 = vlaneseq
  %v1670 = vshrl.u32 %v1669, 7
  %v1671 = vsub.s32 %v1668, %v1670
  %v1672 = vrot.slane %v1665, %v1671
  %v1674 = vunpack.c.l.s4 1966171168
  %v1675 = vunpack.c.0.s8 %v1674
  %v1676 = vlaneseq
  %v1677 = vshrl.u32 %v1676, 7
  %v1678 = vsub.s32 %v1675, %v1677
  %v1679 = vrot.slane %v1672, %v1678
  %v1681 = vadd.f32 %v74, %v1679
  %v1682 = vld [vmem:[%s698] sm:$0xff]
  %v1683 = vld [vmem:[%s698 + $0x8] sm:$0xff]
  %v1684 = vld [vmem:[%s698 + $0x10] sm:$0xff]
  %v1685 = vld [vmem:[%s698 + $0x18] sm:$0xff]
  %v1686 = vrot.slane %v1584, 1
  %v1687 = vsel %vm287, %v1686, 0
  %1689 = vmatprep.subr.mxu0 %v1683
  %1690 = vmatpush1.msra.mxu0 %v1682
  %1691 = vmatprep.subr.mxu0 %v1685
  %1692 = vmatpush1.msra.mxu0 %v1684
  %1693 = vmatprep.subr.mxu0 0.0
  %1694 = vmatpush1.msra.mxu0 0.0
  %1695 = vmatprep.subr.mxu0 0.0
  %1696 = vmatpush1.msra.mxu0 0.0
  %1697 = vmatprep.subr.mxu0 0.0
  %1698 = vmatpush1.msra.mxu0 0.0
  %1699 = vmatprep.subr.mxu0 0.0
  %1700 = vmatpush1.msra.mxu0 0.0
  %1701 = vmatprep.subr.mxu0 0.0
  %1702 = vmatpush1.msra.mxu0 0.0
  %1703 = vmatprep.subr.mxu0 0.0
  %1704 = vmatpush1.msra.mxu0 0.0
  %1705 = vmatprep.subr.mxu0 0.0
  %1706 = vmatpush1.msra.mxu0 0.0
  %1707 = vmatprep.subr.mxu0 0.0
  %1708 = vmatpush1.msra.mxu0 0.0
  %1709 = vmatprep.subr.mxu0 0.0
  %1710 = vmatpush1.msra.mxu0 0.0
  %1711 = vmatprep.subr.mxu0 0.0
  %1712 = vmatpush1.msra.mxu0 0.0
  %1713 = vmatprep.subr.mxu0 0.0
  %1714 = vmatpush1.msra.mxu0 0.0
  %1715 = vmatprep.subr.mxu0 0.0
  %1716 = vmatpush1.msra.mxu0 0.0
  %1717 = vmatprep.subr.mxu0 0.0
  %1718 = vmatpush1.msra.mxu0 0.0
  %1719 = vmatprep.subr.mxu0 0.0
  %1720 = vmatpush1.msra.mxu0 0.0
  %1721 = vmatprep.subr.mxu0 0.0
  %1722 = vmatpush1.msra.mxu0 0.0
  %1723 = vmatprep.subr.mxu0 0.0
  %1724 = vmatpush1.msra.mxu0 0.0
  %1725 = vmatprep.subr.mxu0 0.0
  %1726 = vmatpush1.msra.mxu0 0.0
  %1727 = vmatprep.subr.mxu0 0.0
  %1728 = vmatpush1.msra.mxu0 0.0
  %1729 = vmatprep.subr.mxu0 0.0
  %1730 = vmatpush1.msra.mxu0 0.0
  %1731 = vmatprep.subr.mxu0 0.0
  %1732 = vmatpush1.msra.mxu0 0.0
  %1733 = vmatprep.subr.mxu0 0.0
  %1734 = vmatpush1.msra.mxu0 0.0
  %1735 = vmatprep.subr.mxu0 0.0
  %1736 = vmatpush1.msra.mxu0 0.0
  %1737 = vmatprep.subr.mxu0 0.0
  %1738 = vmatpush1.msra.mxu0 0.0
  %1739 = vmatprep.subr.mxu0 0.0
  %1740 = vmatpush1.msra.mxu0 0.0
  %1741 = vmatprep.subr.mxu0 0.0
  %1742 = vmatpush1.msra.mxu0 0.0
  %1743 = vmatprep.subr.mxu0 0.0
  %1744 = vmatpush1.msra.mxu0 0.0
  %1745 = vmatprep.subr.mxu0 0.0
  %1746 = vmatpush1.msra.mxu0 0.0
  %1747 = vmatprep.subr.mxu0 0.0
  %1748 = vmatpush1.msra.mxu0 0.0
  %1749 = vmatprep.subr.mxu0 0.0
  %1750 = vmatpush1.msra.mxu0 0.0
  %1751 = vmatprep.subr.mxu0 0.0
  %1752 = vmatpush1.msra.mxu0 0.0
  %1753 = vmatprep.mubr.f32.mxu0 0.0
  %1754 = vmatmul.mubr.f32.gmra.mrb[0].mxu0 %v1687
  %v1755 = vpop.f32.mrb[0].mxu0
  %v1756 = vadd.f32 0.0, %v1755
  %v1757 = vpop.f32.mrb[0].mxu0
  %v1758 = vadd.f32 0.0, %v1757
  %1759 = vdwg.mxu0
  %v1762 = vcombine.low %v1756, %v1758
  %v1764 = vunpack.c.l.s4 1966171168
  %v1765 = vunpack.c.0.s8 %v1764
  %v1766 = vlaneseq
  %v1767 = vshrl.u32 %v1766, 7
  %v1768 = vsub.s32 %v1765, %v1767
  %v1769 = vrot.slane %v1762, %v1768
  %v1771 = vunpack.c.l.s4 1966171168
  %v1772 = vunpack.c.0.s8 %v1771
  %v1773 = vlaneseq
  %v1774 = vshrl.u32 %v1773, 7
  %v1775 = vsub.s32 %v1772, %v1774
  %v1776 = vrot.slane %v1769, %v1775
  %v1778 = vadd.f32 %v1681, %v1776
  %v1779 = vld [vmem:[%s796] sm:$0xff]
  %v1780 = vld [vmem:[%s796 + $0x8] sm:$0xff]
  %v1781 = vld [vmem:[%s796 + $0x10] sm:$0xff]
  %v1782 = vld [vmem:[%s796 + $0x18] sm:$0xff]
  %v1783 = vrot.slane %v1584, 2
  %v1784 = vsel %vm287, %v1783, 0
  %1786 = vmatprep.subr.mxu0 %v1780
  %1787 = vmatpush1.msra.mxu0 %v1779
  %1788 = vmatprep.subr.mxu0 %v1782
  %1789 = vmatpush1.msra.mxu0 %v1781
  %1790 = vmatprep.subr.mxu0 0.0
  %1791 = vmatpush1.msra.mxu0 0.0
  %1792 = vmatprep.subr.mxu0 0.0
  %1793 = vmatpush1.msra.mxu0 0.0
  %1794 = vmatprep.subr.mxu0 0.0
  %1795 = vmatpush1.msra.mxu0 0.0
  %1796 = vmatprep.subr.mxu0 0.0
  %1797 = vmatpush1.msra.mxu0 0.0
  %1798 = vmatprep.subr.mxu0 0.0
  %1799 = vmatpush1.msra.mxu0 0.0
  %1800 = vmatprep.subr.mxu0 0.0
  %1801 = vmatpush1.msra.mxu0 0.0
  %1802 = vmatprep.subr.mxu0 0.0
  %1803 = vmatpush1.msra.mxu0 0.0
  %1804 = vmatprep.subr.mxu0 0.0
  %1805 = vmatpush1.msra.mxu0 0.0
  %1806 = vmatprep.subr.mxu0 0.0
  %1807 = vmatpush1.msra.mxu0 0.0
  %1808 = vmatprep.subr.mxu0 0.0
  %1809 = vmatpush1.msra.mxu0 0.0
  %1810 = vmatprep.subr.mxu0 0.0
  %1811 = vmatpush1.msra.mxu0 0.0
  %1812 = vmatprep.subr.mxu0 0.0
  %1813 = vmatpush1.msra.mxu0 0.0
  %1814 = vmatprep.subr.mxu0 0.0
  %1815 = vmatpush1.msra.mxu0 0.0
  %1816 = vmatprep.subr.mxu0 0.0
  %1817 = vmatpush1.msra.mxu0 0.0
  %1818 = vmatprep.subr.mxu0 0.0
  %1819 = vmatpush1.msra.mxu0 0.0
  %1820 = vmatprep.subr.mxu0 0.0
  %1821 = vmatpush1.msra.mxu0 0.0
  %1822 = vmatprep.subr.mxu0 0.0
  %1823 = vmatpush1.msra.mxu0 0.0
  %1824 = vmatprep.subr.mxu0 0.0
  %1825 = vmatpush1.msra.mxu0 0.0
  %1826 = vmatprep.subr.mxu0 0.0
  %1827 = vmatpush1.msra.mxu0 0.0
  %1828 = vmatprep.subr.mxu0 0.0
  %1829 = vmatpush1.msra.mxu0 0.0
  %1830 = vmatprep.subr.mxu0 0.0
  %1831 = vmatpush1.msra.mxu0 0.0
  %1832 = vmatprep.subr.mxu0 0.0
  %1833 = vmatpush1.msra.mxu0 0.0
  %1834 = vmatprep.subr.mxu0 0.0
  %1835 = vmatpush1.msra.mxu0 0.0
  %1836 = vmatprep.subr.mxu0 0.0
  %1837 = vmatpush1.msra.mxu0 0.0
  %1838 = vmatprep.subr.mxu0 0.0
  %1839 = vmatpush1.msra.mxu0 0.0
  %1840 = vmatprep.subr.mxu0 0.0
  %1841 = vmatpush1.msra.mxu0 0.0
  %1842 = vmatprep.subr.mxu0 0.0
  %1843 = vmatpush1.msra.mxu0 0.0
  %1844 = vmatprep.subr.mxu0 0.0
  %1845 = vmatpush1.msra.mxu0 0.0
  %1846 = vmatprep.subr.mxu0 0.0
  %1847 = vmatpush1.msra.mxu0 0.0
  %1848 = vmatprep.subr.mxu0 0.0
  %1849 = vmatpush1.msra.mxu0 0.0
  %1850 = vmatprep.mubr.f32.mxu0 0.0
  %1851 = vmatmul.mubr.f32.gmra.mrb[0].mxu0 %v1784
  %v1852 = vpop.f32.mrb[0].mxu0
  %v1853 = vadd.f32 0.0, %v1852
  %v1854 = vpop.f32.mrb[0].mxu0
  %v1855 = vadd.f32 0.0, %v1854
  %1856 = vdwg.mxu0
  %v1859 = vcombine.low %v1853, %v1855
  %v1861 = vunpack.c.l.s4 1966171168
  %v1862 = vunpack.c.0.s8 %v1861
  %v1863 = vlaneseq
  %v1864 = vshrl.u32 %v1863, 7
  %v1865 = vsub.s32 %v1862, %v1864
  %v1866 = vrot.slane %v1859, %v1865
  %v1868 = vunpack.c.l.s4 1966171168
  %v1869 = vunpack.c.0.s8 %v1868
  %v1870 = vlaneseq
  %v1871 = vshrl.u32 %v1870, 7
  %v1872 = vsub.s32 %v1869, %v1871
  %v1873 = vrot.slane %v1866, %v1872
  %v1875 = vadd.f32 %v1778, %v1873
  %v1876 = vld [vmem:[%s894] sm:$0xff]
  %v1877 = vld [vmem:[%s894 + $0x8] sm:$0xff]
  %v1878 = vld [vmem:[%s894 + $0x10] sm:$0xff]
  %v1879 = vld [vmem:[%s894 + $0x18] sm:$0xff]
  %v1880 = vrot.slane %v1584, 3
  %v1881 = vsel %vm287, %v1880, 0
  %1883 = vmatprep.subr.mxu0 %v1877
  %1884 = vmatpush1.msra.mxu0 %v1876
  %1885 = vmatprep.subr.mxu0 %v1879
  %1886 = vmatpush1.msra.mxu0 %v1878
  %1887 = vmatprep.subr.mxu0 0.0
  %1888 = vmatpush1.msra.mxu0 0.0
  %1889 = vmatprep.subr.mxu0 0.0
  %1890 = vmatpush1.msra.mxu0 0.0
  %1891 = vmatprep.subr.mxu0 0.0
  %1892 = vmatpush1.msra.mxu0 0.0
  %1893 = vmatprep.subr.mxu0 0.0
  %1894 = vmatpush1.msra.mxu0 0.0
  %1895 = vmatprep.subr.mxu0 0.0
  %1896 = vmatpush1.msra.mxu0 0.0
  %1897 = vmatprep.subr.mxu0 0.0
  %1898 = vmatpush1.msra.mxu0 0.0
  %1899 = vmatprep.subr.mxu0 0.0
  %1900 = vmatpush1.msra.mxu0 0.0
  %1901 = vmatprep.subr.mxu0 0.0
  %1902 = vmatpush1.msra.mxu0 0.0
  %1903 = vmatprep.subr.mxu0 0.0
  %1904 = vmatpush1.msra.mxu0 0.0
  %1905 = vmatprep.subr.mxu0 0.0
  %1906 = vmatpush1.msra.mxu0 0.0
  %1907 = vmatprep.subr.mxu0 0.0
  %1908 = vmatpush1.msra.mxu0 0.0
  %1909 = vmatprep.subr.mxu0 0.0
  %1910 = vmatpush1.msra.mxu0 0.0
  %1911 = vmatprep.subr.mxu0 0.0
  %1912 = vmatpush1.msra.mxu0 0.0
  %1913 = vmatprep.subr.mxu0 0.0
  %1914 = vmatpush1.msra.mxu0 0.0
  %1915 = vmatprep.subr.mxu0 0.0
  %1916 = vmatpush1.msra.mxu0 0.0
  %1917 = vmatprep.subr.mxu0 0.0
  %1918 = vmatpush1.msra.mxu0 0.0
  %1919 = vmatprep.subr.mxu0 0.0
  %1920 = vmatpush1.msra.mxu0 0.0
  %1921 = vmatprep.subr.mxu0 0.0
  %1922 = vmatpush1.msra.mxu0 0.0
  %1923 = vmatprep.subr.mxu0 0.0
  %1924 = vmatpush1.msra.mxu0 0.0
  %1925 = vmatprep.subr.mxu0 0.0
  %1926 = vmatpush1.msra.mxu0 0.0
  %1927 = vmatprep.subr.mxu0 0.0
  %1928 = vmatpush1.msra.mxu0 0.0
  %1929 = vmatprep.subr.mxu0 0.0
  %1930 = vmatpush1.msra.mxu0 0.0
  %1931 = vmatprep.subr.mxu0 0.0
  %1932 = vmatpush1.msra.mxu0 0.0
  %1933 = vmatprep.subr.mxu0 0.0
  %1934 = vmatpush1.msra.mxu0 0.0
  %1935 = vmatprep.subr.mxu0 0.0
  %1936 = vmatpush1.msra.mxu0 0.0
  %1937 = vmatprep.subr.mxu0 0.0
  %1938 = vmatpush1.msra.mxu0 0.0
  %1939 = vmatprep.subr.mxu0 0.0
  %1940 = vmatpush1.msra.mxu0 0.0
  %1941 = vmatprep.subr.mxu0 0.0
  %1942 = vmatpush1.msra.mxu0 0.0
  %1943 = vmatprep.subr.mxu0 0.0
  %1944 = vmatpush1.msra.mxu0 0.0
  %1945 = vmatprep.subr.mxu0 0.0
  %1946 = vmatpush1.msra.mxu0 0.0
  %1947 = vmatprep.mubr.f32.mxu0 0.0
  %1948 = vmatmul.mubr.f32.gmra.mrb[0].mxu0 %v1881
  %v1949 = vpop.f32.mrb[0].mxu0
  %v1950 = vadd.f32 0.0, %v1949
  %v1951 = vpop.f32.mrb[0].mxu0
  %v1952 = vadd.f32 0.0, %v1951
  %1953 = vdwg.mxu0
  %v1956 = vcombine.low %v1950, %v1952
  %v1958 = vunpack.c.l.s4 1966171168
  %v1959 = vunpack.c.0.s8 %v1958
  %v1960 = vlaneseq
  %v1961 = vshrl.u32 %v1960, 7
  %v1962 = vsub.s32 %v1959, %v1961
  %v1963 = vrot.slane %v1956, %v1962
  %v1965 = vunpack.c.l.s4 1966171168
  %v1966 = vunpack.c.0.s8 %v1965
  %v1967 = vlaneseq
  %v1968 = vshrl.u32 %v1967, 7
  %v1969 = vsub.s32 %v1966, %v1968
  %v1970 = vrot.slane %v1963, %v1969
  %v1972 = vadd.f32 %v1875, %v1970
  %v1973 = vmax.f32 %v1972, 0.0
  %v1975 = vlaneseq
  %v1976 = vshrl.u32 %v1975, 7
  %v1977 = vsub.s32 0, %v1976
  %v1978 = vrot.slane %v1973, %v1977
  %v1979 = vlaneseq
  %v1980 = vshrl.u32 %v1979, 7
  %v1981 = vsub.s32 1, %v1980
  %v1982 = vrot.slane %v1973, %v1981
  %1985 = vmatprep.subr.mxu0 0.0
  %1986 = vmatpush1.msra.mxu0 %v75
  %1987 = vmatprep.subr.mxu0 0.0
  %1988 = vmatpush1.msra.mxu0 %v76
  %1989 = vmatprep.subr.mxu0 0.0
  %1990 = vmatpush1.msra.mxu0 %v77
  %1991 = vmatprep.subr.mxu0 0.0
  %1992 = vmatpush1.msra.mxu0 %v78
  %1993 = vmatprep.subr.mxu0 0.0
  %1994 = vmatpush1.msra.mxu0 %v79
  %1995 = vmatprep.subr.mxu0 0.0
  %1996 = vmatpush1.msra.mxu0 %v80
  %1997 = vmatprep.subr.mxu0 0.0
  %1998 = vmatpush1.msra.mxu0 %v81
  %1999 = vmatprep.subr.mxu0 0.0
  %2000 = vmatpush1.msra.mxu0 %v82
  %2001 = vmatprep.subr.mxu0 0.0
  %2002 = vmatpush1.msra.mxu0 %v83
  %2003 = vmatprep.subr.mxu0 0.0
  %2004 = vmatpush1.msra.mxu0 %v84
  %2005 = vmatprep.subr.mxu0 0.0
  %2006 = vmatpush1.msra.mxu0 %v85
  %2007 = vmatprep.subr.mxu0 0.0
  %2008 = vmatpush1.msra.mxu0 %v86
  %2009 = vmatprep.subr.mxu0 0.0
  %2010 = vmatpush1.msra.mxu0 %v87
  %2011 = vmatprep.subr.mxu0 0.0
  %2012 = vmatpush1.msra.mxu0 %v88
  %2013 = vmatprep.subr.mxu0 0.0
  %2014 = vmatpush1.msra.mxu0 %v89
  %2015 = vmatprep.subr.mxu0 0.0
  %2016 = vmatpush1.msra.mxu0 %v90
  %2017 = vmatprep.subr.mxu0 0.0
  %2018 = vmatpush1.msra.mxu0 %v91
  %2019 = vmatprep.subr.mxu0 0.0
  %2020 = vmatpush1.msra.mxu0 %v92
  %2021 = vmatprep.subr.mxu0 0.0
  %2022 = vmatpush1.msra.mxu0 %v93
  %2023 = vmatprep.subr.mxu0 0.0
  %2024 = vmatpush1.msra.mxu0 %v94
  %2025 = vmatprep.subr.mxu0 0.0
  %2026 = vmatpush1.msra.mxu0 %v95
  %2027 = vmatprep.subr.mxu0 0.0
  %2028 = vmatpush1.msra.mxu0 %v96
  %2029 = vmatprep.subr.mxu0 0.0
  %2030 = vmatpush1.msra.mxu0 %v97
  %2031 = vmatprep.subr.mxu0 0.0
  %2032 = vmatpush1.msra.mxu0 %v98
  %2033 = vmatprep.subr.mxu0 0.0
  %2034 = vmatpush1.msra.mxu0 %v99
  %2035 = vmatprep.subr.mxu0 0.0
  %2036 = vmatpush1.msra.mxu0 %v100
  %2037 = vmatprep.subr.mxu0 0.0
  %2038 = vmatpush1.msra.mxu0 %v101
  %2039 = vmatprep.subr.mxu0 0.0
  %2040 = vmatpush1.msra.mxu0 %v102
  %2041 = vmatprep.subr.mxu0 0.0
  %2042 = vmatpush1.msra.mxu0 %v103
  %2043 = vmatprep.subr.mxu0 0.0
  %2044 = vmatpush1.msra.mxu0 %v104
  %2045 = vmatprep.subr.mxu0 0.0
  %2046 = vmatpush1.msra.mxu0 %v105
  %2047 = vmatprep.subr.mxu0 0.0
  %2048 = vmatpush1.msra.mxu0 %v106
  %2049 = vmatprep.mubr.f32.mxu0 %v1982
  %2050 = vmatmul.mubr.f32.gmra.mrb[0].mxu0 %v1978
  %v2051 = vpop.f32.mrb[0].mxu0
  %v2052 = vadd.f32 %v107, %v2051
  %v2053 = vpop.f32.mrb[0].mxu0
  %2054 = vdwg.mxu0
  %v2055 = vmax.f32 %v2052, 0.0
  %v2057 = vsel %vm1075, %v2055, 0
  %2059 = vmatprep.subr.mxu0 0.0
  %2060 = vmatpush1.msra.mxu0 %v108
  %2061 = vmatprep.subr.mxu0 0.0
  %2062 = vmatpush1.msra.mxu0 %v109
  %2063 = vmatprep.subr.mxu0 0.0
  %2064 = vmatpush1.msra.mxu0 %v110
  %2065 = vmatprep.subr.mxu0 0.0
  %2066 = vmatpush1.msra.mxu0 %v111
  %2067 = vmatprep.subr.mxu0 0.0
  %2068 = vmatpush1.msra.mxu0 %v112
  %2069 = vmatprep.subr.mxu0 0.0
  %2070 = vmatpush1.msra.mxu0 %v113
  %2071 = vmatprep.subr.mxu0 0.0
  %2072 = vmatpush1.msra.mxu0 %v114
  %2073 = vmatprep.subr.mxu0 0.0
  %2074 = vmatpush1.msra.mxu0 %v115
  %2075 = vmatprep.subr.mxu0 0.0
  %2076 = vmatpush1.msra.mxu0 0.0
  %2077 = vmatprep.subr.mxu0 0.0
  %2078 = vmatpush1.msra.mxu0 0.0
  %2079 = vmatprep.subr.mxu0 0.0
  %2080 = vmatpush1.msra.mxu0 0.0
  %2081 = vmatprep.subr.mxu0 0.0
  %2082 = vmatpush1.msra.mxu0 0.0
  %2083 = vmatprep.subr.mxu0 0.0
  %2084 = vmatpush1.msra.mxu0 0.0
  %2085 = vmatprep.subr.mxu0 0.0
  %2086 = vmatpush1.msra.mxu0 0.0
  %2087 = vmatprep.subr.mxu0 0.0
  %2088 = vmatpush1.msra.mxu0 0.0
  %2089 = vmatprep.subr.mxu0 0.0
  %2090 = vmatpush1.msra.mxu0 0.0
  %2091 = vmatprep.subr.mxu0 0.0
  %2092 = vmatpush1.msra.mxu0 0.0
  %2093 = vmatprep.subr.mxu0 0.0
  %2094 = vmatpush1.msra.mxu0 0.0
  %2095 = vmatprep.subr.mxu0 0.0
  %2096 = vmatpush1.msra.mxu0 0.0
  %2097 = vmatprep.subr.mxu0 0.0
  %2098 = vmatpush1.msra.mxu0 0.0
  %2099 = vmatprep.subr.mxu0 0.0
  %2100 = vmatpush1.msra.mxu0 0.0
  %2101 = vmatprep.subr.mxu0 0.0
  %2102 = vmatpush1.msra.mxu0 0.0
  %2103 = vmatprep.subr.mxu0 0.0
  %2104 = vmatpush1.msra.mxu0 0.0
  %2105 = vmatprep.subr.mxu0 0.0
  %2106 = vmatpush1.msra.mxu0 0.0
  %2107 = vmatprep.subr.mxu0 0.0
  %2108 = vmatpush1.msra.mxu0 0.0
  %2109 = vmatprep.subr.mxu0 0.0
  %2110 = vmatpush1.msra.mxu0 0.0
  %2111 = vmatprep.subr.mxu0 0.0
  %2112 = vmatpush1.msra.mxu0 0.0
  %2113 = vmatprep.subr.mxu0 0.0
  %2114 = vmatpush1.msra.mxu0 0.0
  %2115 = vmatprep.subr.mxu0 0.0
  %2116 = vmatpush1.msra.mxu0 0.0
  %2117 = vmatprep.subr.mxu0 0.0
  %2118 = vmatpush1.msra.mxu0 0.0
  %2119 = vmatprep.subr.mxu0 0.0
  %2120 = vmatpush1.msra.mxu0 0.0
  %2121 = vmatprep.subr.mxu0 0.0
  %2122 = vmatpush1.msra.mxu0 0.0
  %2123 = vmatprep.mubr.f32.mxu0 0.0
  %2124 = vmatmul.mubr.f32.gmra.mrb[0].mxu0 %v2057
  %v2125 = vpop.f32.mrb[0].mxu0
  %v2126 = vadd.f32 %v116, %v2125
  %v2127 = vpop.f32.mrb[0].mxu0
  %2128 = vdwg.mxu0
  %2129 = vst.msk [vmem:[%s17 + $0x1] sm:$0x1] %vm1149, %v2126
  // Predicated region
  $region70: #{csgnet_forward.1} parent=0 // pred_check
    _
  $region71: #{csgnet_forward.1} parent=0 // pred_check_branch
    %2131 = sbr.rel (0) target = $region73
  $region72: #{csgnet_forward.1} parent=0 // pred_region
    _
  $region73: #{csgnet_forward.1} parent=0 // pred_fallthru
    _
  // Predicated region
  $region74: #{csgnet_forward.1} parent=0 // pred_check
    _
  $region75: #{csgnet_forward.1} parent=0 // pred_check_branch
    %2133 = sbr.rel (0) target = $region77
  $region76: #{csgnet_forward.1} parent=0 // pred_region
    _
  $region77: #{csgnet_forward.1} parent=0 // pred_fallthru
    _

</llo_original>
